<compile_context>
chip_gen: v7x
topology: tpu7x:2x2x1
jax: 0.10.0
libtpu: 0.0.40
codegen_flags: <defaults>
</compile_context>

<pallas_src>
import jax
import jax.numpy as jnp
from jax.experimental import pallas as pl
from jax.experimental.pallas import tpu as pltpu

IN_DIM, H1, H2, OUT_DIM = 1000, 512, 256, 267
OUT_PAD = 384  # lane-aligned fc3 output width (multiple of 128)


def mlp_kernel(x_ref, w1_ref, b1_ref, w2_hbm, b2_ref, w3_hbm, b3_ref,
               o_ref, w2_vmem, w3_vmem, sem):
    # Kick off the w2/w3 HBM->VMEM DMAs immediately so they overlap the fc1
    # matmul.  Only the first batch block issues them; the VMEM scratch
    # persists across (sequential, "arbitrary") grid steps.
    @pl.when(pl.program_id(0) == 0)
    def _start_weight_dma():
        pltpu.make_async_copy(w2_hbm, w2_vmem, sem.at[0]).start()
        pltpu.make_async_copy(w3_hbm, w3_vmem, sem.at[1]).start()

    # fc1 + ReLU: cast activations to bf16 in-kernel (no wrapper pass),
    # f32 accumulation on the MXU.
    x = x_ref[...].astype(jnp.bfloat16)
    h = jnp.dot(x, w1_ref[...], preferred_element_type=jnp.float32)
    h = jnp.maximum(h + b1_ref[...], 0.0).astype(jnp.bfloat16)

    # fc2 + ReLU (wait for its weights only now — DMA ran under fc1 compute).
    @pl.when(pl.program_id(0) == 0)
    def _wait_w2():
        pltpu.make_async_copy(w2_hbm, w2_vmem, sem.at[0]).wait()

    h = jnp.dot(h, w2_vmem[...], preferred_element_type=jnp.float32)
    h = jnp.maximum(h + b2_ref[...], 0.0).astype(jnp.bfloat16)

    # fc3 (no activation).
    @pl.when(pl.program_id(0) == 0)
    def _wait_w3():
        pltpu.make_async_copy(w3_hbm, w3_vmem, sem.at[1]).wait()

    h = jnp.dot(h, w3_vmem[...], preferred_element_type=jnp.float32)
    o_ref[...] = (h + b3_ref[...]).astype(o_ref.dtype)


def classifier_forward(x, prepared_params):
    """x: (B, 1000) f32.  prepared_params: output of prepare_params()."""
    w1, b1, w2, b2, w3, b3 = prepared_params
    B = x.shape[0]

    # Batch tiling: one block for small batch; 128-row blocks for large batch
    # so the MXU rows fill up while weights are fetched once per call.
    if B <= 128:
        BM = ((B + 7) // 8) * 8          # sublane-align
    else:
        BM = 128
    B_pad = ((B + BM - 1) // BM) * BM
    x_p = x if B_pad == B else jnp.pad(x, ((0, B_pad - B), (0, 0)))
    grid = (B_pad // BM,)

    flops = 2 * B_pad * (IN_DIM * H1 + H1 * H2 + H2 * OUT_PAD)
    bytes_accessed = (
        x_p.size * 4                                  # f32 input
        + (w1.size + w2.size + w3.size) * 2           # bf16 weights
        + (b1.size + b2.size + b3.size) * 4           # f32 biases
        + B_pad * OUT_PAD * 4                         # f32 output
    )

    out = pl.pallas_call(
        mlp_kernel,
        out_shape=jax.ShapeDtypeStruct((B_pad, OUT_PAD), jnp.float32),
        grid=grid,
        in_specs=[
            pl.BlockSpec((BM, IN_DIM), lambda i: (i, 0)),   # x (batch-tiled)
            pl.BlockSpec((IN_DIM, H1), lambda i: (0, 0)),   # w1 (resident)
            pl.BlockSpec((1, H1), lambda i: (0, 0)),        # b1
            pl.BlockSpec(memory_space=pl.ANY),              # w2 -> manual DMA
            pl.BlockSpec((1, H2), lambda i: (0, 0)),        # b2
            pl.BlockSpec(memory_space=pl.ANY),              # w3 -> manual DMA
            pl.BlockSpec((1, OUT_PAD), lambda i: (0, 0)),   # b3
        ],
        out_specs=pl.BlockSpec((BM, OUT_PAD), lambda i: (i, 0)),
        scratch_shapes=[
            pltpu.VMEM((H1, H2), jnp.bfloat16),             # w2 buffer
            pltpu.VMEM((H2, OUT_PAD), jnp.bfloat16),        # w3 buffer
            pltpu.SemaphoreType.DMA((2,)),
        ],
        compiler_params=pltpu.CompilerParams(
            # "arbitrary": the step-0 weight DMA + persistent scratch requires
            # sequential grid execution on one core.  For a megacore split the
            # DMA would have to be issued per core instead.
            dimension_semantics=("arbitrary",),
            vmem_limit_bytes=8 << 20,
        ),
        cost_estimate=pl.CostEstimate(
            flops=flops, transcendentals=0, bytes_accessed=bytes_accessed),
    )(x_p, w1, b1, w2, b2, w3, b3)

    # Slice back to the true batch and the true 267 classes (padded logit
    # columns 267..383 are exactly 0 and must not reach any softmax/argmax).
    return out[:B, :OUT_DIM]


def init_params(key):
    # Deterministic f32 init mirroring nn.Linear's default:
    # U(-1/sqrt(fan_in), 1/sqrt(fan_in)) for both weight and bias.
    dims = [(IN_DIM, H1), (H1, H2), (H2, OUT_DIM)]
    params = []
    for i, (fan_in, fan_out) in enumerate(dims):
        kw, kb = jax.random.split(jax.random.fold_in(key, i))
        bound = 1.0 / (fan_in ** 0.5)
        w = jax.random.uniform(kw, (fan_in, fan_out), jnp.float32, -bound, bound)
        b = jax.random.uniform(kb, (1, fan_out), jnp.float32, -bound, bound)
        params += [w, b]
    return tuple(params)


def prepare_params(params):
    """Cast weights to bf16 and lane-pad the fc3 output dim (done once, offline)."""
    w1, b1, w2, b2, w3, b3 = params
    w1p = w1.astype(jnp.bfloat16)
    w2p = w2.astype(jnp.bfloat16)
    w3p = jnp.pad(w3, ((0, 0), (0, OUT_PAD - OUT_DIM))).astype(jnp.bfloat16)
    b3p = jnp.pad(b3, ((0, 0), (0, OUT_PAD - OUT_DIM)))
    return (w1p, b1, w2p, b2, w3p, b3p)


def reference_forward_f32(x, params):
    """True f32 numerics of the PyTorch module."""
    w1, b1, w2, b2, w3, b3 = params
    h = jnp.maximum(x @ w1 + b1, 0.0)
    h = jnp.maximum(h @ w2 + b2, 0.0)
    return h @ w3 + b3


def reference_forward_bf16(x, prepared_params):
    """Mirrors the kernel's numerics: bf16 operands, f32 accumulation."""
    w1, b1, w2, b2, w3, b3 = prepared_params
    h = jnp.dot(x.astype(jnp.bfloat16), w1, preferred_element_type=jnp.float32) + b1
    h = jnp.maximum(h, 0.0).astype(jnp.bfloat16)
    h = jnp.dot(h, w2, preferred_element_type=jnp.float32) + b2
    h = jnp.maximum(h, 0.0).astype(jnp.bfloat16)
    h = jnp.dot(h, w3, preferred_element_type=jnp.float32) + b3
    return h[:, :OUT_DIM]


if __name__ == "__main__":
    key = jax.random.PRNGKey(0)
    params = init_params(key)
    prepared = prepare_params(params)
    x = jax.random.normal(jax.random.fold_in(key, 100), (8, IN_DIM), jnp.float32)

    fwd = jax.jit(classifier_forward)
    out = jax.block_until_ready(fwd(x, prepared))

    ref_bf16 = reference_forward_bf16(x, prepared)   # same numerics as kernel
    ref_f32 = reference_forward_f32(x, params)       # true PyTorch-f32 numerics

    assert out.shape == (8, OUT_DIM)
    assert bool(jnp.all(jnp.isfinite(out)))
    assert jnp.allclose(out, ref_bf16, atol=1e-2, rtol=1e-2)
    # bf16 weights/activations vs. the original f32 model: ~1e-2-level logits drift.
    assert jnp.allclose(out, ref_f32, atol=5e-2, rtol=5e-2)
    print("KERNEL_OK")
</pallas_src>

<mosaic_0001>
module attributes {stable_mosaic.version = 11 : i64} {
  func.func @mlp_kernel(%arg0: i32, %arg1: memref<8x1000xf32, #tpu.memory_space<vmem>>, %arg2: memref<1000x512xbf16, #tpu.memory_space<vmem>>, %arg3: memref<1x512xf32, #tpu.memory_space<vmem>>, %arg4: memref<512x256xbf16, #tpu.memory_space<any>>, %arg5: memref<1x256xf32, #tpu.memory_space<vmem>>, %arg6: memref<256x384xbf16, #tpu.memory_space<any>>, %arg7: memref<1x384xf32, #tpu.memory_space<vmem>>, %arg8: memref<8x384xf32, #tpu.memory_space<vmem>>, %arg9: memref<512x256xbf16, #tpu.memory_space<vmem>>, %arg10: memref<256x384xbf16, #tpu.memory_space<vmem>>, %arg11: memref<2x!tpu.dma_semaphore, #tpu.memory_space<semaphore_mem>>) attributes {dimension_semantics = [#tpu.dimension_semantics<arbitrary>], iteration_bounds = array<i64: 1>, scalar_prefetch = 0 : i64, scratch_operands = 3 : i64, tpu.core_type = #tpu.core_type<tc>, window_params = [{transform_indices = @transform_0, window_bounds = array<i64: 8, 1000>}, {pipeline_mode = #tpu.pipeline_mode<synchronous>, transform_indices = @transform_1, window_bounds = array<i64: 1000, 512>}, {pipeline_mode = #tpu.pipeline_mode<synchronous>, transform_indices = @transform_2, window_bounds = array<i64: 1, 512>}, {}, {pipeline_mode = #tpu.pipeline_mode<synchronous>, transform_indices = @transform_4, window_bounds = array<i64: 1, 256>}, {}, {pipeline_mode = #tpu.pipeline_mode<synchronous>, transform_indices = @transform_6, window_bounds = array<i64: 1, 384>}, {transform_indices = @transform_7, window_bounds = array<i64: 8, 384>}]} {
    %c0_i32 = arith.constant 0 : i32
    %0 = arith.cmpi eq, %arg0, %c0_i32 : i32
    %1 = arith.extui %0 : i1 to i32
    %c0_i32_0 = arith.constant 0 : i32
    %2 = arith.cmpi ne, %1, %c0_i32_0 : i32
    scf.if %2 {
      %c0_i32_24 = arith.constant 0 : i32
      %33 = tpu.memref_slice %arg11[%c0_i32_24] : memref<2x!tpu.dma_semaphore, #tpu.memory_space<semaphore_mem>> -> memref<1x!tpu.dma_semaphore, #tpu.memory_space<semaphore_mem>>
      %34 = tpu.memref_squeeze %33 : memref<1x!tpu.dma_semaphore, #tpu.memory_space<semaphore_mem>> -> memref<!tpu.dma_semaphore, #tpu.memory_space<semaphore_mem>>
      tpu.enqueue_dma source(%arg4 : memref<512x256xbf16, #tpu.memory_space<any>>) target(%arg9 : memref<512x256xbf16, #tpu.memory_space<vmem>>) target_semaphore(%34 : memref<!tpu.dma_semaphore, #tpu.memory_space<semaphore_mem>>)
      %c1_i32 = arith.constant 1 : i32
      %35 = tpu.memref_slice %arg11[%c1_i32] : memref<2x!tpu.dma_semaphore, #tpu.memory_space<semaphore_mem>> -> memref<1x!tpu.dma_semaphore, #tpu.memory_space<semaphore_mem>>
      %36 = tpu.memref_squeeze %35 : memref<1x!tpu.dma_semaphore, #tpu.memory_space<semaphore_mem>> -> memref<!tpu.dma_semaphore, #tpu.memory_space<semaphore_mem>>
      tpu.enqueue_dma source(%arg6 : memref<256x384xbf16, #tpu.memory_space<any>>) target(%arg10 : memref<256x384xbf16, #tpu.memory_space<vmem>>) target_semaphore(%36 : memref<!tpu.dma_semaphore, #tpu.memory_space<semaphore_mem>>)
    } else {
    }
    %c0 = arith.constant 0 : index
    %c0_1 = arith.constant 0 : index
    %3 = vector.load %arg1[%c0, %c0_1] : memref<8x1000xf32, #tpu.memory_space<vmem>>, vector<8x1000xf32>
    %4 = arith.truncf %3 : vector<8x1000xf32> to vector<8x1000xbf16>
    %c0_2 = arith.constant 0 : index
    %c0_3 = arith.constant 0 : index
    %5 = vector.load %arg2[%c0_2, %c0_3] : memref<1000x512xbf16, #tpu.memory_space<vmem>>, vector<1000x512xbf16>
    %cst = arith.constant dense<0.000000e+00> : vector<8x512xf32>
    %6 = tpu.matmul %4, %5, %cst {dimension_numbers = #tpu.dot_dimension_numbers<[1], [0], [0], [1], [0, 0, 1, 1], [], []>} : vector<8x1000xbf16>, vector<1000x512xbf16>, vector<8x512xf32> -> vector<8x512xf32>
    %c0_4 = arith.constant 0 : index
    %c0_5 = arith.constant 0 : index
    %7 = vector.load %arg3[%c0_4, %c0_5] : memref<1x512xf32, #tpu.memory_space<vmem>>, vector<1x512xf32>
    %8 = vector.broadcast %7 : vector<1x512xf32> to vector<8x512xf32>
    %9 = arith.addf %6, %8 : vector<8x512xf32>
    %cst_6 = arith.constant 0.000000e+00 : f32
    %10 = vector.broadcast %cst_6 : f32 to vector<8x512xf32>
    %11 = arith.maximumf %9, %10 : vector<8x512xf32>
    %12 = arith.truncf %11 : vector<8x512xf32> to vector<8x512xbf16>
    %c0_i32_7 = arith.constant 0 : i32
    %13 = arith.cmpi eq, %arg0, %c0_i32_7 : i32
    %14 = arith.extui %13 : i1 to i32
    %c0_i32_8 = arith.constant 0 : i32
    %15 = arith.cmpi ne, %14, %c0_i32_8 : i32
    scf.if %15 {
      %c0_i32_24 = arith.constant 0 : i32
      %33 = tpu.memref_slice %arg11[%c0_i32_24] : memref<2x!tpu.dma_semaphore, #tpu.memory_space<semaphore_mem>> -> memref<1x!tpu.dma_semaphore, #tpu.memory_space<semaphore_mem>>
      %34 = tpu.memref_squeeze %33 : memref<1x!tpu.dma_semaphore, #tpu.memory_space<semaphore_mem>> -> memref<!tpu.dma_semaphore, #tpu.memory_space<semaphore_mem>>
      tpu.wait_dma2 semaphore(%34 : memref<!tpu.dma_semaphore, #tpu.memory_space<semaphore_mem>>) src(%arg4 : memref<512x256xbf16, #tpu.memory_space<any>>) dst(%arg9 : memref<512x256xbf16, #tpu.memory_space<vmem>>)
    } else {
    }
    %c0_9 = arith.constant 0 : index
    %c0_10 = arith.constant 0 : index
    %16 = vector.load %arg9[%c0_9, %c0_10] : memref<512x256xbf16, #tpu.memory_space<vmem>>, vector<512x256xbf16>
    %cst_11 = arith.constant dense<0.000000e+00> : vector<8x256xf32>
    %17 = tpu.matmul %12, %16, %cst_11 {dimension_numbers = #tpu.dot_dimension_numbers<[1], [0], [0], [1], [0, 0, 1, 1], [], []>} : vector<8x512xbf16>, vector<512x256xbf16>, vector<8x256xf32> -> vector<8x256xf32>
    %c0_12 = arith.constant 0 : index
    %c0_13 = arith.constant 0 : index
    %18 = vector.load %arg5[%c0_12, %c0_13] : memref<1x256xf32, #tpu.memory_space<vmem>>, vector<1x256xf32>
    %19 = vector.broadcast %18 : vector<1x256xf32> to vector<8x256xf32>
    %20 = arith.addf %17, %19 : vector<8x256xf32>
    %cst_14 = arith.constant 0.000000e+00 : f32
    %21 = vector.broadcast %cst_14 : f32 to vector<8x256xf32>
    %22 = arith.maximumf %20, %21 : vector<8x256xf32>
    %23 = arith.truncf %22 : vector<8x256xf32> to vector<8x256xbf16>
    %c0_i32_15 = arith.constant 0 : i32
    %24 = arith.cmpi eq, %arg0, %c0_i32_15 : i32
    %25 = arith.extui %24 : i1 to i32
    %c0_i32_16 = arith.constant 0 : i32
    %26 = arith.cmpi ne, %25, %c0_i32_16 : i32
    scf.if %26 {
      %c1_i32 = arith.constant 1 : i32
      %33 = tpu.memref_slice %arg11[%c1_i32] : memref<2x!tpu.dma_semaphore, #tpu.memory_space<semaphore_mem>> -> memref<1x!tpu.dma_semaphore, #tpu.memory_space<semaphore_mem>>
      %34 = tpu.memref_squeeze %33 : memref<1x!tpu.dma_semaphore, #tpu.memory_space<semaphore_mem>> -> memref<!tpu.dma_semaphore, #tpu.memory_space<semaphore_mem>>
      tpu.wait_dma2 semaphore(%34 : memref<!tpu.dma_semaphore, #tpu.memory_space<semaphore_mem>>) src(%arg6 : memref<256x384xbf16, #tpu.memory_space<any>>) dst(%arg10 : memref<256x384xbf16, #tpu.memory_space<vmem>>)
    } else {
    }
    %c0_17 = arith.constant 0 : index
    %c0_18 = arith.constant 0 : index
    %27 = vector.load %arg10[%c0_17, %c0_18] : memref<256x384xbf16, #tpu.memory_space<vmem>>, vector<256x384xbf16>
    %cst_19 = arith.constant dense<0.000000e+00> : vector<8x384xf32>
    %28 = tpu.matmul %23, %27, %cst_19 {dimension_numbers = #tpu.dot_dimension_numbers<[1], [0], [0], [1], [0, 0, 1, 1], [], []>} : vector<8x256xbf16>, vector<256x384xbf16>, vector<8x384xf32> -> vector<8x384xf32>
    %c0_20 = arith.constant 0 : index
    %c0_21 = arith.constant 0 : index
    %29 = vector.load %arg7[%c0_20, %c0_21] : memref<1x384xf32, #tpu.memory_space<vmem>>, vector<1x384xf32>
    %30 = vector.broadcast %29 : vector<1x384xf32> to vector<8x384xf32>
    %31 = arith.addf %28, %30 : vector<8x384xf32>
    %c0_22 = arith.constant 0 : index
    %c0_23 = arith.constant 0 : index
    %32 = vector.load %arg8[%c0_22, %c0_23] : memref<8x384xf32, #tpu.memory_space<vmem>>, vector<8x384xf32>
    tpu.vector_store %arg8[%c0_22, %c0_23], %31 {strides = array<i32>} : memref<8x384xf32, #tpu.memory_space<vmem>>, vector<8x384xf32>,
    return
  }
  func.func @transform_0(%arg0: i32) -> (i32, i32) {
    %c0_i32 = arith.constant 0 : i32
    %c0_i32_0 = arith.constant 0 : i32
    return %arg0, %c0_i32 : i32, i32
  }
  func.func @transform_1(%arg0: i32) -> (i32, i32) {
    %c0_i32 = arith.constant 0 : i32
    %c0_i32_0 = arith.constant 0 : i32
    %c0_i32_1 = arith.constant 0 : i32
    return %c0_i32, %c0_i32_0 : i32, i32
  }
  func.func @transform_2(%arg0: i32) -> (i32, i32) {
    %c0_i32 = arith.constant 0 : i32
    %c0_i32_0 = arith.constant 0 : i32
    %c0_i32_1 = arith.constant 0 : i32
    return %c0_i32, %c0_i32_0 : i32, i32
  }
  func.func @transform_4(%arg0: i32) -> (i32, i32) {
    %c0_i32 = arith.constant 0 : i32
    %c0_i32_0 = arith.constant 0 : i32
    %c0_i32_1 = arith.constant 0 : i32
    return %c0_i32, %c0_i32_0 : i32, i32
  }
  func.func @transform_6(%arg0: i32) -> (i32, i32) {
    %c0_i32 = arith.constant 0 : i32
    %c0_i32_0 = arith.constant 0 : i32
    %c0_i32_1 = arith.constant 0 : i32
    return %c0_i32, %c0_i32_0 : i32, i32
  }
  func.func @transform_7(%arg0: i32) -> (i32, i32) {
    %c0_i32 = arith.constant 0 : i32
    %c0_i32_0 = arith.constant 0 : i32
    return %arg0, %c0_i32 : i32, i32
  }
}

</mosaic_0001>

<llo_original>
// kernel: classifier_forward.1
$region0: #{classifier_forward.1}
  #allocation0 [shape = 'u32[]', space=smem, size = 0x4, offset = 0x4, fixed_abs, tag = 'smem constant byte address 0x4 - core index']
  #allocation1 [shape = 'u32[144,128]{1,0:T(1,128)}', space=vmem, size = 0x12000, scoped, tag = 'internal scratch']
  #allocation2 [shape = 'bf16[512,256]{1,0:T(16,128)(2,1)}', space=vmem, size = 0x40000, scoped, tag = 'scratch operand']
  #allocation3 [shape = 'bf16[256,384]{1,0:T(16,128)(2,1)}', space=vmem, size = 0x30000, scoped, tag = 'scratch operand']
  #allocation4 [shape = 's32[2]{0}', space=sflag, size = 0x8, scoped, tag = 'scratch operand']
  #allocation11 [shape = 's32[]', space=sflag, size = 0x4, offset = 0, fixed_abs, tag = 'sflag constant byte address 0x0 - dummy sync flag']
  #allocation13 [shape = 's32[]', space=sflag, size = 0x4, offset = 0, fixed_abs, tag = 'sflag constant byte address 0x0 - dummy sync flag']
  %s0 = inlined_call_operand.hbm [shape: f32[8,1000], index: 0, kind: input, shape index: {}]
  %s1 = inlined_call_operand.hbm [shape: bf16[1000,512], index: 1, kind: input, shape index: {}]
  %s2 = inlined_call_operand.vmem [shape: f32[1,512], index: 2, kind: input, shape index: {}]
  %s3 = inlined_call_operand.hbm [shape: bf16[512,256], index: 3, kind: input, shape index: {}]
  %s4 = inlined_call_operand.vmem [shape: f32[1,256], index: 4, kind: input, shape index: {}]
  %s5 = inlined_call_operand.hbm [shape: bf16[256,384], index: 5, kind: input, shape index: {}]
  %s6 = inlined_call_operand.vmem [shape: f32[1,384], index: 6, kind: input, shape index: {}]
  %s7 = inlined_call_operand.hbm [shape: f32[8,384], index: 7, kind: output, shape index: {}]
  %s8 = sld [smem:[#allocation0]]
  $region50: #{classifier_forward.1} parent=0
    _
  %s10 = ssub.s32 1, %s8
  %s11 = scalar_select 0, %s10, %s8
  $region1: #{classifier_forward.1} parent=0
    #allocation5 [shape = 'u8[32768]{0}', space=vmem, size = 0x8000, scoped, tag = 'input window, operand 0, single buffered']
    #allocation6 [shape = 's32[1]{0}', space=sflag, size = 0x4, scoped, tag = 'scoped memory for classifier_forward.1']
    #allocation7 [shape = 's32[1]{0}', space=sflag, size = 0x4, scoped, tag = 'scoped memory for classifier_forward.1']
    #allocation8 [shape = 'u8[1024000]{0}', space=vmem, size = 0xfa000, scoped, tag = 'input window, operand 1, single buffered']
    #allocation9 [shape = 's32[1]{0}', space=sflag, size = 0x4, scoped, tag = 'scoped memory for classifier_forward.1']
    #allocation10 [shape = 'u8[12288]{0}', space=vmem, size = 0x3000, scoped, tag = 'output window, operand 0, single buffered']
    %12 = vsyncpa [#allocation6], 0
    %13 = vsyncpa [#allocation9], 0
    %14 = vsyncpa [#allocation7], 0
    // Predicated region
    $region2: #{classifier_forward.1} parent=1 // pred_check
      _
    $region3: #{classifier_forward.1} parent=1 // pred_check_branch
      %16 = sbr.rel (0) target = $region5
    $region4: #{classifier_forward.1} parent=1 // pred_region
      %s18 = ssub.s32 1024, 1024
      %19 = vsyncadd [#allocation6], %s18
      %s21 = sshll.u32 [#allocation5], 4
      %s22 = int_to_ptr.vmem [resolvable:$true] %s21
      %24 = dma.hbm_to_vmem [thread:$0]  %s0, 1024, %s22, [#allocation6]
    $region5: #{classifier_forward.1} parent=1 // pred_fallthru
      _
    // Predicated region
    $region6: #{classifier_forward.1} parent=1 // pred_check
      _
    $region7: #{classifier_forward.1} parent=1 // pred_check_branch
      %26 = sbr.rel (0) target = $region9
    $region8: #{classifier_forward.1} parent=1 // pred_region
      %s28 = ssub.s32 32000, 32000
      %29 = vsyncadd [#allocation9], %s28
      %s30 = sshll.u32 [#allocation8], 4
      %s31 = int_to_ptr.vmem [resolvable:$true] %s30
      %36 = dma.hbm_to_vmem [thread:$0]  %s1, 32000, %s31, [#allocation9], 256, 256, 16
    $region9: #{classifier_forward.1} parent=1 // pred_fallthru
      _
    // Predicated region
    $region10: #{classifier_forward.1} parent=1 // pred_check
      _
    $region11: #{classifier_forward.1} parent=1 // pred_check_branch
      %38 = sbr.rel (0) target = $region13
    $region12: #{classifier_forward.1} parent=1 // pred_region
      _
    $region13: #{classifier_forward.1} parent=1 // pred_fallthru
      _
    // Predicated region
    $region14: #{classifier_forward.1} parent=1 // pred_check
      _
    $region15: #{classifier_forward.1} parent=1 // pred_check_branch
      %40 = sbr.rel (0) target = $region17
    $region16: #{classifier_forward.1} parent=1 // pred_region
      _
    $region17: #{classifier_forward.1} parent=1 // pred_fallthru
      _
    // Predicated region
    $region18: #{classifier_forward.1} parent=1 // pred_check
      _
    $region19: #{classifier_forward.1} parent=1 // pred_check_branch
      %42 = sbr.rel (0) target = $region21
    $region20: #{classifier_forward.1} parent=1 // pred_region
      _
    $region21: #{classifier_forward.1} parent=1 // pred_fallthru
      _
    // Predicated region
    $region22: #{classifier_forward.1} parent=1 // pred_check
      _
    $region23: #{classifier_forward.1} parent=1 // pred_check_branch
      %44 = sbr.rel (0) target = $region25
    $region24: #{classifier_forward.1} parent=1 // pred_region
      %45 = dma.done [#allocation6], 1024
    $region25: #{classifier_forward.1} parent=1 // pred_fallthru
      _
    // Predicated region
    $region26: #{classifier_forward.1} parent=1 // pred_check
      _
    $region27: #{classifier_forward.1} parent=1 // pred_check_branch
      %47 = sbr.rel (0) target = $region29
    $region28: #{classifier_forward.1} parent=1 // pred_region
      %48 = dma.done [#allocation9], 32000
    $region29: #{classifier_forward.1} parent=1 // pred_fallthru
      _
    %p50 = scmp.eq.s32.totalorder 0, 0
    // Predicated region
    $region30: #{classifier_forward.1} parent=1 // pred_check
      %p51 = pneg %p50
    $region31: #{classifier_forward.1} parent=1 // pred_check_branch
      %53 = sbr.rel (%p51) target = $region33
    $region32: #{classifier_forward.1} parent=1 // pred_region
      #allocation12 [shape = 'u32[9]{0}', space=smem, size = 0x24, scoped, tag = 'DMA stride descriptor']
      #allocation14 [shape = 'u32[9]{0}', space=smem, size = 0x24, scoped, tag = 'DMA stride descriptor']
      %s55 = sshll.u32 1, 14
      %s56 = sxor.u32 4294967295, %s55
      %s58 = sld [smem:[#allocation0]]
      %s59 = sadd.s32 2, %s58
      %s61 = sshll.u32 7, 26
      %s62 = sxor.u32 4294967295, %s61
      %s63 = sand.u32 0, %s62
      %s64 = sshll.u32 %s59, 26
      %s65 = sor.u32 %s63, %s64
      %s66 = sshll.u32 [#allocation2], 4
      %s67 = int_to_ptr.vmem [resolvable:$true] %s66
      %70 = sst [smem:[#allocation12]] 256
      %s71 = scalar_lea.smem [#allocation12], 1
      %72 = sst [smem:[%s71]] 256
      %s73 = scalar_lea.smem [#allocation12], 2
      %74 = sst [smem:[%s73]] 2
      %s75 = scalar_lea.smem [#allocation12], 3
      %76 = sst [smem:[%s75]] 64
      %s77 = scalar_lea.smem [#allocation12], 4
      %78 = sst [smem:[%s77]] 128
      %s79 = scalar_lea.smem [#allocation12], 5
      %80 = sst [smem:[%s79]] 2
      %s81 = scalar_lea.smem [#allocation12], 6
      %82 = sst [smem:[%s81]] 128
      %s83 = scalar_lea.smem [#allocation12], 7
      %84 = sst [smem:[%s83]] 64
      %s85 = scalar_lea.smem [#allocation12], 8
      %86 = sst [smem:[%s85]] 4
      %88 = dma.general %s3, 8192, %s67, [#allocation4], [#allocation11], [#allocation12], %s65, 0
      %s89 = scalar_lea.sflag [#allocation4], 1
      %s91 = sshll.u32 1, 14
      %s92 = sxor.u32 4294967295, %s91
      %s94 = sadd.s32 2, %s58
      %s96 = sshll.u32 7, 26
      %s97 = sxor.u32 4294967295, %s96
      %s98 = sand.u32 0, %s97
      %s99 = sshll.u32 %s94, 26
      %s100 = sor.u32 %s98, %s99
      %s101 = sshll.u32 [#allocation3], 4
      %s102 = int_to_ptr.vmem [resolvable:$true] %s101
      %105 = sst [smem:[#allocation14]] 384
      %s106 = scalar_lea.smem [#allocation14], 1
      %107 = sst [smem:[%s106]] 384
      %s108 = scalar_lea.smem [#allocation14], 2
      %109 = sst [smem:[%s108]] 3
      %s110 = scalar_lea.smem [#allocation14], 3
      %111 = sst [smem:[%s110]] 64
      %s112 = scalar_lea.smem [#allocation14], 4
      %113 = sst [smem:[%s112]] 128
      %s114 = scalar_lea.smem [#allocation14], 5
      %115 = sst [smem:[%s114]] 2
      %s116 = scalar_lea.smem [#allocation14], 6
      %117 = sst [smem:[%s116]] 192
      %s118 = scalar_lea.smem [#allocation14], 7
      %119 = sst [smem:[%s118]] 64
      %s120 = scalar_lea.smem [#allocation14], 8
      %121 = sst [smem:[%s120]] 4
      %123 = dma.general %s5, 6144, %s102, %s89, [#allocation13], [#allocation14], %s100, 0
    $region33: #{classifier_forward.1} parent=1 // pred_fallthru
      _
    %v124 = vld [vmem:[#allocation5] sm:$0xff]
    %v125 = vld [vmem:[#allocation5 + $0x8] sm:$0xff]
    %v126 = vld [vmem:[#allocation5 + $0x10] sm:$0xff]
    %v127 = vld [vmem:[#allocation5 + $0x18] sm:$0xff]
    %v128 = vld [vmem:[#allocation5 + $0x20] sm:$0xff]
    %v129 = vld [vmem:[#allocation5 + $0x28] sm:$0xff]
    %v130 = vld [vmem:[#allocation5 + $0x30] sm:$0xff]
    %v131 = vld [vmem:[#allocation5 + $0x38] sm:$0xff]
    %v132 = vpack.c.bf16 %v124, %v124
    %v133 = vpack.c.bf16 %v125, %v125
    %v134 = vpack.c.bf16 %v126, %v126
    %v135 = vpack.c.bf16 %v127, %v127
    %v136 = vpack.c.bf16 %v128, %v128
    %v137 = vpack.c.bf16 %v129, %v129
    %v138 = vpack.c.bf16 %v130, %v130
    %v139 = vpack.c.bf16 %v131, %v131
    %v140 = vld [vmem:[#allocation8] sm:$0xff]
    %v141 = vld [vmem:[#allocation8 + $0x8] sm:$0xff]
    %v142 = vld [vmem:[#allocation8 + $0x10] sm:$0xff]
    %v143 = vld [vmem:[#allocation8 + $0x18] sm:$0xff]
    %v144 = vld [vmem:[#allocation8 + $0x20] sm:$0xff]
    %v145 = vld [vmem:[#allocation8 + $0x28] sm:$0xff]
    %v146 = vld [vmem:[#allocation8 + $0x30] sm:$0xff]
    %v147 = vld [vmem:[#allocation8 + $0x38] sm:$0xff]
    %v148 = vld [vmem:[#allocation8 + $0x40] sm:$0xff]
    %v149 = vld [vmem:[#allocation8 + $0x48] sm:$0xff]
    %v150 = vld [vmem:[#allocation8 + $0x50] sm:$0xff]
    %v151 = vld [vmem:[#allocation8 + $0x58] sm:$0xff]
    %v152 = vld [vmem:[#allocation8 + $0x60] sm:$0xff]
    %v153 = vld [vmem:[#allocation8 + $0x68] sm:$0xff]
    %v154 = vld [vmem:[#allocation8 + $0x70] sm:$0xff]
    %v155 = vld [vmem:[#allocation8 + $0x78] sm:$0xff]
    %v156 = vld [vmem:[#allocation8 + $0x80] sm:$0xff]
    %v157 = vld [vmem:[#allocation8 + $0x88] sm:$0xff]
    %v158 = vld [vmem:[#allocation8 + $0x90] sm:$0xff]
    %v159 = vld [vmem:[#allocation8 + $0x98] sm:$0xff]
    %v160 = vld [vmem:[#allocation8 + $0xa0] sm:$0xff]
    %v161 = vld [vmem:[#allocation8 + $0xa8] sm:$0xff]
    %v162 = vld [vmem:[#allocation8 + $0xb0] sm:$0xff]
    %v163 = vld [vmem:[#allocation8 + $0xb8] sm:$0xff]
    %v164 = vld [vmem:[#allocation8 + $0xc0] sm:$0xff]
    %v165 = vld [vmem:[#allocation8 + $0xc8] sm:$0xff]
    %v166 = vld [vmem:[#allocation8 + $0xd0] sm:$0xff]
    %v167 = vld [vmem:[#allocation8 + $0xd8] sm:$0xff]
    %v168 = vld [vmem:[#allocation8 + $0xe0] sm:$0xff]
    %v169 = vld [vmem:[#allocation8 + $0xe8] sm:$0xff]
    %v170 = vld [vmem:[#allocation8 + $0xf0] sm:$0xff]
    %v171 = vld [vmem:[#allocation8 + $0xf8] sm:$0xff]
    %v172 = vld [vmem:[#allocation8 + $0x100] sm:$0xff]
    %v173 = vld [vmem:[#allocation8 + $0x108] sm:$0xff]
    %v174 = vld [vmem:[#allocation8 + $0x110] sm:$0xff]
    %v175 = vld [vmem:[#allocation8 + $0x118] sm:$0xff]
    %v176 = vld [vmem:[#allocation8 + $0x120] sm:$0xff]
    %v177 = vld [vmem:[#allocation8 + $0x128] sm:$0xff]
    %v178 = vld [vmem:[#allocation8 + $0x130] sm:$0xff]
    %v179 = vld [vmem:[#allocation8 + $0x138] sm:$0xff]
    %v180 = vld [vmem:[#allocation8 + $0x140] sm:$0xff]
    %v181 = vld [vmem:[#allocation8 + $0x148] sm:$0xff]
    %v182 = vld [vmem:[#allocation8 + $0x150] sm:$0xff]
    %v183 = vld [vmem:[#allocation8 + $0x158] sm:$0xff]
    %v184 = vld [vmem:[#allocation8 + $0x160] sm:$0xff]
    %v185 = vld [vmem:[#allocation8 + $0x168] sm:$0xff]
    %v186 = vld [vmem:[#allocation8 + $0x170] sm:$0xff]
    %v187 = vld [vmem:[#allocation8 + $0x178] sm:$0xff]
    %v188 = vld [vmem:[#allocation8 + $0x180] sm:$0xff]
    %v189 = vld [vmem:[#allocation8 + $0x188] sm:$0xff]
    %v190 = vld [vmem:[#allocation8 + $0x190] sm:$0xff]
    %v191 = vld [vmem:[#allocation8 + $0x198] sm:$0xff]
    %v192 = vld [vmem:[#allocation8 + $0x1a0] sm:$0xff]
    %v193 = vld [vmem:[#allocation8 + $0x1a8] sm:$0xff]
    %v194 = vld [vmem:[#allocation8 + $0x1b0] sm:$0xff]
    %v195 = vld [vmem:[#allocation8 + $0x1b8] sm:$0xff]
    %v196 = vld [vmem:[#allocation8 + $0x1c0] sm:$0xff]
    %v197 = vld [vmem:[#allocation8 + $0x1c8] sm:$0xff]
    %v198 = vld [vmem:[#allocation8 + $0x1d0] sm:$0xff]
    %v199 = vld [vmem:[#allocation8 + $0x1d8] sm:$0xff]
    %v200 = vld [vmem:[#allocation8 + $0x1e0] sm:$0xff]
    %v201 = vld [vmem:[#allocation8 + $0x1e8] sm:$0xff]
    %v202 = vld [vmem:[#allocation8 + $0x1f0] sm:$0xff]
    %v203 = vld [vmem:[#allocation8 + $0x1f8] sm:$0xff]
    %v204 = vld [vmem:[#allocation8 + $0x200] sm:$0xff]
    %v205 = vld [vmem:[#allocation8 + $0x208] sm:$0xff]
    %v206 = vld [vmem:[#allocation8 + $0x210] sm:$0xff]
    %v207 = vld [vmem:[#allocation8 + $0x218] sm:$0xff]
    %v208 = vld [vmem:[#allocation8 + $0x220] sm:$0xff]
    %v209 = vld [vmem:[#allocation8 + $0x228] sm:$0xff]
    %v210 = vld [vmem:[#allocation8 + $0x230] sm:$0xff]
    %v211 = vld [vmem:[#allocation8 + $0x238] sm:$0xff]
    %v212 = vld [vmem:[#allocation8 + $0x240] sm:$0xff]
    %v213 = vld [vmem:[#allocation8 + $0x248] sm:$0xff]
    %v214 = vld [vmem:[#allocation8 + $0x250] sm:$0xff]
    %v215 = vld [vmem:[#allocation8 + $0x258] sm:$0xff]
    %v216 = vld [vmem:[#allocation8 + $0x260] sm:$0xff]
    %v217 = vld [vmem:[#allocation8 + $0x268] sm:$0xff]
    %v218 = vld [vmem:[#allocation8 + $0x270] sm:$0xff]
    %v219 = vld [vmem:[#allocation8 + $0x278] sm:$0xff]
    %v220 = vld [vmem:[#allocation8 + $0x280] sm:$0xff]
    %v221 = vld [vmem:[#allocation8 + $0x288] sm:$0xff]
    %v222 = vld [vmem:[#allocation8 + $0x290] sm:$0xff]
    %v223 = vld [vmem:[#allocation8 + $0x298] sm:$0xff]
    %v224 = vld [vmem:[#allocation8 + $0x2a0] sm:$0xff]
    %v225 = vld [vmem:[#allocation8 + $0x2a8] sm:$0xff]
    %v226 = vld [vmem:[#allocation8 + $0x2b0] sm:$0xff]
    %v227 = vld [vmem:[#allocation8 + $0x2b8] sm:$0xff]
    %v228 = vld [vmem:[#allocation8 + $0x2c0] sm:$0xff]
    %v229 = vld [vmem:[#allocation8 + $0x2c8] sm:$0xff]
    %v230 = vld [vmem:[#allocation8 + $0x2d0] sm:$0xff]
    %v231 = vld [vmem:[#allocation8 + $0x2d8] sm:$0xff]
    %v232 = vld [vmem:[#allocation8 + $0x2e0] sm:$0xff]
    %v233 = vld [vmem:[#allocation8 + $0x2e8] sm:$0xff]
    %v234 = vld [vmem:[#allocation8 + $0x2f0] sm:$0xff]
    %v235 = vld [vmem:[#allocation8 + $0x2f8] sm:$0xff]
    %v236 = vld [vmem:[#allocation8 + $0x300] sm:$0xff]
    %v237 = vld [vmem:[#allocation8 + $0x308] sm:$0xff]
    %v238 = vld [vmem:[#allocation8 + $0x310] sm:$0xff]
    %v239 = vld [vmem:[#allocation8 + $0x318] sm:$0xff]
    %v240 = vld [vmem:[#allocation8 + $0x320] sm:$0xff]
    %v241 = vld [vmem:[#allocation8 + $0x328] sm:$0xff]
    %v242 = vld [vmem:[#allocation8 + $0x330] sm:$0xff]
    %v243 = vld [vmem:[#allocation8 + $0x338] sm:$0xff]
    %v244 = vld [vmem:[#allocation8 + $0x340] sm:$0xff]
    %v245 = vld [vmem:[#allocation8 + $0x348] sm:$0xff]
    %v246 = vld [vmem:[#allocation8 + $0x350] sm:$0xff]
    %v247 = vld [vmem:[#allocation8 + $0x358] sm:$0xff]
    %v248 = vld [vmem:[#allocation8 + $0x360] sm:$0xff]
    %v249 = vld [vmem:[#allocation8 + $0x368] sm:$0xff]
    %v250 = vld [vmem:[#allocation8 + $0x370] sm:$0xff]
    %v251 = vld [vmem:[#allocation8 + $0x378] sm:$0xff]
    %v252 = vld [vmem:[#allocation8 + $0x380] sm:$0xff]
    %v253 = vld [vmem:[#allocation8 + $0x388] sm:$0xff]
    %v254 = vld [vmem:[#allocation8 + $0x390] sm:$0xff]
    %v255 = vld [vmem:[#allocation8 + $0x398] sm:$0xff]
    %v256 = vld [vmem:[#allocation8 + $0x3a0] sm:$0xff]
    %v257 = vld [vmem:[#allocation8 + $0x3a8] sm:$0xff]
    %v258 = vld [vmem:[#allocation8 + $0x3b0] sm:$0xff]
    %v259 = vld [vmem:[#allocation8 + $0x3b8] sm:$0xff]
    %v260 = vld [vmem:[#allocation8 + $0x3c0] sm:$0xff]
    %v261 = vld [vmem:[#allocation8 + $0x3c8] sm:$0xff]
    %v262 = vld [vmem:[#allocation8 + $0x3d0] sm:$0xff]
    %v263 = vld [vmem:[#allocation8 + $0x3d8] sm:$0xff]
    %v264 = vld [vmem:[#allocation8 + $0x3e0] sm:$0xff]
    %v265 = vld [vmem:[#allocation8 + $0x3e8] sm:$0xff]
    %v266 = vld [vmem:[#allocation8 + $0x3f0] sm:$0xff]
    %v267 = vld [vmem:[#allocation8 + $0x3f8] sm:$0xff]
    %v268 = vld [vmem:[#allocation8 + $0x400] sm:$0xff]
    %v269 = vld [vmem:[#allocation8 + $0x408] sm:$0xff]
    %v270 = vld [vmem:[#allocation8 + $0x410] sm:$0xff]
    %v271 = vld [vmem:[#allocation8 + $0x418] sm:$0xff]
    %v272 = vld [vmem:[#allocation8 + $0x420] sm:$0xff]
    %v273 = vld [vmem:[#allocation8 + $0x428] sm:$0xff]
    %v274 = vld [vmem:[#allocation8 + $0x430] sm:$0xff]
    %v275 = vld [vmem:[#allocation8 + $0x438] sm:$0xff]
    %v276 = vld [vmem:[#allocation8 + $0x440] sm:$0xff]
    %v277 = vld [vmem:[#allocation8 + $0x448] sm:$0xff]
    %v278 = vld [vmem:[#allocation8 + $0x450] sm:$0xff]
    %v279 = vld [vmem:[#allocation8 + $0x458] sm:$0xff]
    %v280 = vld [vmem:[#allocation8 + $0x460] sm:$0xff]
    %v281 = vld [vmem:[#allocation8 + $0x468] sm:$0xff]
    %v282 = vld [vmem:[#allocation8 + $0x470] sm:$0xff]
    %v283 = vld [vmem:[#allocation8 + $0x478] sm:$0xff]
    %v284 = vld [vmem:[#allocation8 + $0x480] sm:$0xff]
    %v285 = vld [vmem:[#allocation8 + $0x488] sm:$0xff]
    %v286 = vld [vmem:[#allocation8 + $0x490] sm:$0xff]
    %v287 = vld [vmem:[#allocation8 + $0x498] sm:$0xff]
    %v288 = vld [vmem:[#allocation8 + $0x4a0] sm:$0xff]
    %v289 = vld [vmem:[#allocation8 + $0x4a8] sm:$0xff]
    %v290 = vld [vmem:[#allocation8 + $0x4b0] sm:$0xff]
    %v291 = vld [vmem:[#allocation8 + $0x4b8] sm:$0xff]
    %v292 = vld [vmem:[#allocation8 + $0x4c0] sm:$0xff]
    %v293 = vld [vmem:[#allocation8 + $0x4c8] sm:$0xff]
    %v294 = vld [vmem:[#allocation8 + $0x4d0] sm:$0xff]
    %v295 = vld [vmem:[#allocation8 + $0x4d8] sm:$0xff]
    %v296 = vld [vmem:[#allocation8 + $0x4e0] sm:$0xff]
    %v297 = vld [vmem:[#allocation8 + $0x4e8] sm:$0xff]
    %v298 = vld [vmem:[#allocation8 + $0x4f0] sm:$0xff]
    %v299 = vld [vmem:[#allocation8 + $0x4f8] sm:$0xff]
    %v300 = vld [vmem:[#allocation8 + $0x500] sm:$0xff]
    %v301 = vld [vmem:[#allocation8 + $0x508] sm:$0xff]
    %v302 = vld [vmem:[#allocation8 + $0x510] sm:$0xff]
    %v303 = vld [vmem:[#allocation8 + $0x518] sm:$0xff]
    %v304 = vld [vmem:[#allocation8 + $0x520] sm:$0xff]
    %v305 = vld [vmem:[#allocation8 + $0x528] sm:$0xff]
    %v306 = vld [vmem:[#allocation8 + $0x530] sm:$0xff]
    %v307 = vld [vmem:[#allocation8 + $0x538] sm:$0xff]
    %v308 = vld [vmem:[#allocation8 + $0x540] sm:$0xff]
    %v309 = vld [vmem:[#allocation8 + $0x548] sm:$0xff]
    %v310 = vld [vmem:[#allocation8 + $0x550] sm:$0xff]
    %v311 = vld [vmem:[#allocation8 + $0x558] sm:$0xff]
    %v312 = vld [vmem:[#allocation8 + $0x560] sm:$0xff]
    %v313 = vld [vmem:[#allocation8 + $0x568] sm:$0xff]
    %v314 = vld [vmem:[#allocation8 + $0x570] sm:$0xff]
    %v315 = vld [vmem:[#allocation8 + $0x578] sm:$0xff]
    %v316 = vld [vmem:[#allocation8 + $0x580] sm:$0xff]
    %v317 = vld [vmem:[#allocation8 + $0x588] sm:$0xff]
    %v318 = vld [vmem:[#allocation8 + $0x590] sm:$0xff]
    %v319 = vld [vmem:[#allocation8 + $0x598] sm:$0xff]
    %v320 = vld [vmem:[#allocation8 + $0x5a0] sm:$0xff]
    %v321 = vld [vmem:[#allocation8 + $0x5a8] sm:$0xff]
    %v322 = vld [vmem:[#allocation8 + $0x5b0] sm:$0xff]
    %v323 = vld [vmem:[#allocation8 + $0x5b8] sm:$0xff]
    %v324 = vld [vmem:[#allocation8 + $0x5c0] sm:$0xff]
    %v325 = vld [vmem:[#allocation8 + $0x5c8] sm:$0xff]
    %v326 = vld [vmem:[#allocation8 + $0x5d0] sm:$0xff]
    %v327 = vld [vmem:[#allocation8 + $0x5d8] sm:$0xff]
    %v328 = vld [vmem:[#allocation8 + $0x5e0] sm:$0xff]
    %v329 = vld [vmem:[#allocation8 + $0x5e8] sm:$0xff]
    %v330 = vld [vmem:[#allocation8 + $0x5f0] sm:$0xff]
    %v331 = vld [vmem:[#allocation8 + $0x5f8] sm:$0xff]
    %v332 = vld [vmem:[#allocation8 + $0x600] sm:$0xff]
    %v333 = vld [vmem:[#allocation8 + $0x608] sm:$0xff]
    %v334 = vld [vmem:[#allocation8 + $0x610] sm:$0xff]
    %v335 = vld [vmem:[#allocation8 + $0x618] sm:$0xff]
    %v336 = vld [vmem:[#allocation8 + $0x620] sm:$0xff]
    %v337 = vld [vmem:[#allocation8 + $0x628] sm:$0xff]
    %v338 = vld [vmem:[#allocation8 + $0x630] sm:$0xff]
    %v339 = vld [vmem:[#allocation8 + $0x638] sm:$0xff]
    %v340 = vld [vmem:[#allocation8 + $0x640] sm:$0xff]
    %v341 = vld [vmem:[#allocation8 + $0x648] sm:$0xff]
    %v342 = vld [vmem:[#allocation8 + $0x650] sm:$0xff]
    %v343 = vld [vmem:[#allocation8 + $0x658] sm:$0xff]
    %v344 = vld [vmem:[#allocation8 + $0x660] sm:$0xff]
    %v345 = vld [vmem:[#allocation8 + $0x668] sm:$0xff]
    %v346 = vld [vmem:[#allocation8 + $0x670] sm:$0xff]
    %v347 = vld [vmem:[#allocation8 + $0x678] sm:$0xff]
    %v348 = vld [vmem:[#allocation8 + $0x680] sm:$0xff]
    %v349 = vld [vmem:[#allocation8 + $0x688] sm:$0xff]
    %v350 = vld [vmem:[#allocation8 + $0x690] sm:$0xff]
    %v351 = vld [vmem:[#allocation8 + $0x698] sm:$0xff]
    %v352 = vld [vmem:[#allocation8 + $0x6a0] sm:$0xff]
    %v353 = vld [vmem:[#allocation8 + $0x6a8] sm:$0xff]
    %v354 = vld [vmem:[#allocation8 + $0x6b0] sm:$0xff]
    %v355 = vld [vmem:[#allocation8 + $0x6b8] sm:$0xff]
    %v356 = vld [vmem:[#allocation8 + $0x6c0] sm:$0xff]
    %v357 = vld [vmem:[#allocation8 + $0x6c8] sm:$0xff]
    %v358 = vld [vmem:[#allocation8 + $0x6d0] sm:$0xff]
    %v359 = vld [vmem:[#allocation8 + $0x6d8] sm:$0xff]
    %v360 = vld [vmem:[#allocation8 + $0x6e0] sm:$0xff]
    %v361 = vld [vmem:[#allocation8 + $0x6e8] sm:$0xff]
    %v362 = vld [vmem:[#allocation8 + $0x6f0] sm:$0xff]
    %v363 = vld [vmem:[#allocation8 + $0x6f8] sm:$0xff]
    %v364 = vld [vmem:[#allocation8 + $0x700] sm:$0xff]
    %v365 = vld [vmem:[#allocation8 + $0x708] sm:$0xff]
    %v366 = vld [vmem:[#allocation8 + $0x710] sm:$0xff]
    %v367 = vld [vmem:[#allocation8 + $0x718] sm:$0xff]
    %v368 = vld [vmem:[#allocation8 + $0x720] sm:$0xff]
    %v369 = vld [vmem:[#allocation8 + $0x728] sm:$0xff]
    %v370 = vld [vmem:[#allocation8 + $0x730] sm:$0xff]
    %v371 = vld [vmem:[#allocation8 + $0x738] sm:$0xff]
    %v372 = vld [vmem:[#allocation8 + $0x740] sm:$0xff]
    %v373 = vld [vmem:[#allocation8 + $0x748] sm:$0xff]
    %v374 = vld [vmem:[#allocation8 + $0x750] sm:$0xff]
    %v375 = vld [vmem:[#allocation8 + $0x758] sm:$0xff]
    %v376 = vld [vmem:[#allocation8 + $0x760] sm:$0xff]
    %v377 = vld [vmem:[#allocation8 + $0x768] sm:$0xff]
    %v378 = vld [vmem:[#allocation8 + $0x770] sm:$0xff]
    %v379 = vld [vmem:[#allocation8 + $0x778] sm:$0xff]
    %v380 = vld [vmem:[#allocation8 + $0x780] sm:$0xff]
    %v381 = vld [vmem:[#allocation8 + $0x788] sm:$0xff]
    %v382 = vld [vmem:[#allocation8 + $0x790] sm:$0xff]
    %v383 = vld [vmem:[#allocation8 + $0x798] sm:$0xff]
    %v384 = vld [vmem:[#allocation8 + $0x7a0] sm:$0xff]
    %v385 = vld [vmem:[#allocation8 + $0x7a8] sm:$0xff]
    %v386 = vld [vmem:[#allocation8 + $0x7b0] sm:$0xff]
    %v387 = vld [vmem:[#allocation8 + $0x7b8] sm:$0xff]
    %v388 = vld [vmem:[#allocation8 + $0x7c0] sm:$0xff]
    %v389 = vld [vmem:[#allocation8 + $0x7c8] sm:$0xff]
    %v390 = vld [vmem:[%s2] sm:$0xf]
    %v392 = vlaneseq
    %v393 = vshrl.u32 %v392, 7
    %v394 = vsub.s32 0, %v393
    %v395 = vrot.slane %v390, %v394
    %v396 = vlaneseq
    %v397 = vshrl.u32 %v396, 7
    %v398 = vsub.s32 1, %v397
    %v399 = vrot.slane %v390, %v398
    %v400 = vlaneseq
    %v401 = vshrl.u32 %v400, 7
    %v402 = vsub.s32 2, %v401
    %v403 = vrot.slane %v390, %v402
    %v404 = vlaneseq
    %v405 = vshrl.u32 %v404, 7
    %v406 = vsub.s32 3, %v405
    %v407 = vrot.slane %v390, %v406
    %v662 = vunpack.c.l.b16 %v140
    %v663 = vunpack.c.h.b16 %v140
    %v664 = vunpack.c.l.b16 %v141
    %v665 = vunpack.c.h.b16 %v141
    %v666 = vunpack.c.l.b16 %v142
    %v667 = vunpack.c.h.b16 %v142
    %v668 = vunpack.c.l.b16 %v143
    %v669 = vunpack.c.h.b16 %v143
    %v670 = vunpack.c.l.b16 %v144
    %v671 = vunpack.c.h.b16 %v144
    %v672 = vunpack.c.l.b16 %v145
    %v673 = vunpack.c.h.b16 %v145
    %v674 = vunpack.c.l.b16 %v146
    %v675 = vunpack.c.h.b16 %v146
    %v676 = vunpack.c.l.b16 %v147
    %v677 = vunpack.c.h.b16 %v147
    %v678 = vunpack.c.l.b16 %v148
    %v679 = vunpack.c.h.b16 %v148
    %v680 = vunpack.c.l.b16 %v149
    %v681 = vunpack.c.h.b16 %v149
    %v682 = vunpack.c.l.b16 %v150
    %v683 = vunpack.c.h.b16 %v150
    %v684 = vunpack.c.l.b16 %v151
    %v685 = vunpack.c.h.b16 %v151
    %v686 = vunpack.c.l.b16 %v152
    %v687 = vunpack.c.h.b16 %v152
    %v688 = vunpack.c.l.b16 %v153
    %v689 = vunpack.c.h.b16 %v153
    %v690 = vunpack.c.l.b16 %v154
    %v691 = vunpack.c.h.b16 %v154
    %v692 = vunpack.c.l.b16 %v155
    %v693 = vunpack.c.h.b16 %v155
    %v694 = vunpack.c.l.b16 %v156
    %v695 = vunpack.c.h.b16 %v156
    %v696 = vunpack.c.l.b16 %v157
    %v697 = vunpack.c.h.b16 %v157
    %v698 = vunpack.c.l.b16 %v158
    %v699 = vunpack.c.h.b16 %v158
    %v700 = vunpack.c.l.b16 %v159
    %v701 = vunpack.c.h.b16 %v159
    %v702 = vunpack.c.l.b16 %v160
    %v703 = vunpack.c.h.b16 %v160
    %v704 = vunpack.c.l.b16 %v161
    %v705 = vunpack.c.h.b16 %v161
    %v706 = vunpack.c.l.b16 %v162
    %v707 = vunpack.c.h.b16 %v162
    %v708 = vunpack.c.l.b16 %v163
    %v709 = vunpack.c.h.b16 %v163
    %v710 = vunpack.c.l.b16 %v164
    %v711 = vunpack.c.h.b16 %v164
    %v712 = vunpack.c.l.b16 %v165
    %v713 = vunpack.c.h.b16 %v165
    %v714 = vunpack.c.l.b16 %v166
    %v715 = vunpack.c.h.b16 %v166
    %v716 = vunpack.c.l.b16 %v167
    %v717 = vunpack.c.h.b16 %v167
    %v718 = vunpack.c.l.b16 %v168
    %v719 = vunpack.c.h.b16 %v168
    %v720 = vunpack.c.l.b16 %v169
    %v721 = vunpack.c.h.b16 %v169
    %v722 = vunpack.c.l.b16 %v170
    %v723 = vunpack.c.h.b16 %v170
    %v724 = vunpack.c.l.b16 %v171
    %v725 = vunpack.c.h.b16 %v171
    %v726 = vunpack.c.l.b16 %v172
    %v727 = vunpack.c.h.b16 %v172
    %v728 = vunpack.c.l.b16 %v173
    %v729 = vunpack.c.h.b16 %v173
    %v730 = vunpack.c.l.b16 %v174
    %v731 = vunpack.c.h.b16 %v174
    %v732 = vunpack.c.l.b16 %v175
    %v733 = vunpack.c.h.b16 %v175
    %v734 = vunpack.c.l.b16 %v176
    %v735 = vunpack.c.h.b16 %v176
    %v736 = vunpack.c.l.b16 %v177
    %v737 = vunpack.c.h.b16 %v177
    %v738 = vunpack.c.l.b16 %v178
    %v739 = vunpack.c.h.b16 %v178
    %v740 = vunpack.c.l.b16 %v179
    %v741 = vunpack.c.h.b16 %v179
    %v742 = vunpack.c.l.b16 %v180
    %v743 = vunpack.c.h.b16 %v180
    %v744 = vunpack.c.l.b16 %v181
    %v745 = vunpack.c.h.b16 %v181
    %v746 = vunpack.c.l.b16 %v182
    %v747 = vunpack.c.h.b16 %v182
    %v748 = vunpack.c.l.b16 %v183
    %v749 = vunpack.c.h.b16 %v183
    %v750 = vunpack.c.l.b16 %v184
    %v751 = vunpack.c.h.b16 %v184
    %v752 = vunpack.c.l.b16 %v185
    %v753 = vunpack.c.h.b16 %v185
    %v754 = vunpack.c.l.b16 %v186
    %v755 = vunpack.c.h.b16 %v186
    %v756 = vunpack.c.l.b16 %v187
    %v757 = vunpack.c.h.b16 %v187
    %v758 = vunpack.c.l.b16 %v188
    %v759 = vunpack.c.h.b16 %v188
    %v760 = vunpack.c.l.b16 %v189
    %v761 = vunpack.c.h.b16 %v189
    %v762 = vunpack.c.l.b16 %v190
    %v763 = vunpack.c.h.b16 %v190
    %v764 = vunpack.c.l.b16 %v191
    %v765 = vunpack.c.h.b16 %v191
    %v766 = vunpack.c.l.b16 %v192
    %v767 = vunpack.c.h.b16 %v192
    %v768 = vunpack.c.l.b16 %v193
    %v769 = vunpack.c.h.b16 %v193
    %v770 = vunpack.c.l.b16 %v194
    %v771 = vunpack.c.h.b16 %v194
    %v772 = vunpack.c.l.b16 %v195
    %v773 = vunpack.c.h.b16 %v195
    %v774 = vunpack.c.l.b16 %v196
    %v775 = vunpack.c.h.b16 %v196
    %v776 = vunpack.c.l.b16 %v197
    %v777 = vunpack.c.h.b16 %v197
    %v778 = vunpack.c.l.b16 %v198
    %v779 = vunpack.c.h.b16 %v198
    %v780 = vunpack.c.l.b16 %v199
    %v781 = vunpack.c.h.b16 %v199
    %v782 = vunpack.c.l.b16 %v200
    %v783 = vunpack.c.h.b16 %v200
    %v784 = vunpack.c.l.b16 %v201
    %v785 = vunpack.c.h.b16 %v201
    %v786 = vunpack.c.l.b16 %v202
    %v787 = vunpack.c.h.b16 %v202
    %v788 = vunpack.c.l.b16 %v203
    %v789 = vunpack.c.h.b16 %v203
    %v790 = vunpack.c.l.b16 %v204
    %v791 = vunpack.c.h.b16 %v204
    %v792 = vunpack.c.l.b16 %v205
    %v793 = vunpack.c.h.b16 %v205
    %v794 = vunpack.c.l.b16 %v206
    %v795 = vunpack.c.h.b16 %v206
    %v796 = vunpack.c.l.b16 %v207
    %v797 = vunpack.c.h.b16 %v207
    %v798 = vunpack.c.l.b16 %v208
    %v799 = vunpack.c.h.b16 %v208
    %v800 = vunpack.c.l.b16 %v209
    %v801 = vunpack.c.h.b16 %v209
    %v802 = vunpack.c.l.b16 %v210
    %v803 = vunpack.c.h.b16 %v210
    %v804 = vunpack.c.l.b16 %v211
    %v805 = vunpack.c.h.b16 %v211
    %v806 = vunpack.c.l.b16 %v212
    %v807 = vunpack.c.h.b16 %v212
    %v808 = vunpack.c.l.b16 %v213
    %v809 = vunpack.c.h.b16 %v213
    %v810 = vunpack.c.l.b16 %v214
    %v811 = vunpack.c.h.b16 %v214
    %v812 = vunpack.c.l.b16 %v215
    %v813 = vunpack.c.h.b16 %v215
    %v814 = vunpack.c.l.b16 %v216
    %v815 = vunpack.c.h.b16 %v216
    %v816 = vunpack.c.l.b16 %v217
    %v817 = vunpack.c.h.b16 %v217
    %v818 = vunpack.c.l.b16 %v218
    %v819 = vunpack.c.h.b16 %v218
    %v820 = vunpack.c.l.b16 %v219
    %v821 = vunpack.c.h.b16 %v219
    %v822 = vunpack.c.l.b16 %v220
    %v823 = vunpack.c.h.b16 %v220
    %v824 = vunpack.c.l.b16 %v221
    %v825 = vunpack.c.h.b16 %v221
    %v826 = vunpack.c.l.b16 %v222
    %v827 = vunpack.c.h.b16 %v222
    %v828 = vunpack.c.l.b16 %v223
    %v829 = vunpack.c.h.b16 %v223
    %v830 = vunpack.c.l.b16 %v224
    %v831 = vunpack.c.h.b16 %v224
    %v832 = vunpack.c.l.b16 %v225
    %v833 = vunpack.c.h.b16 %v225
    %v834 = vunpack.c.l.b16 %v226
    %v835 = vunpack.c.h.b16 %v226
    %v836 = vunpack.c.l.b16 %v227
    %v837 = vunpack.c.h.b16 %v227
    %v838 = vunpack.c.l.b16 %v228
    %v839 = vunpack.c.h.b16 %v228
    %v840 = vunpack.c.l.b16 %v229
    %v841 = vunpack.c.h.b16 %v229
    %v842 = vunpack.c.l.b16 %v230
    %v843 = vunpack.c.h.b16 %v230
    %v844 = vunpack.c.l.b16 %v231
    %v845 = vunpack.c.h.b16 %v231
    %v846 = vunpack.c.l.b16 %v232
    %v847 = vunpack.c.h.b16 %v232
    %v848 = vunpack.c.l.b16 %v233
    %v849 = vunpack.c.h.b16 %v233
    %v850 = vunpack.c.l.b16 %v234
    %v851 = vunpack.c.h.b16 %v234
    %v852 = vunpack.c.l.b16 %v235
    %v853 = vunpack.c.h.b16 %v235
    %v854 = vunpack.c.l.b16 %v236
    %v855 = vunpack.c.h.b16 %v236
    %v856 = vunpack.c.l.b16 %v237
    %v857 = vunpack.c.h.b16 %v237
    %v858 = vunpack.c.l.b16 %v238
    %v859 = vunpack.c.h.b16 %v238
    %v860 = vunpack.c.l.b16 %v239
    %v861 = vunpack.c.h.b16 %v239
    %v862 = vunpack.c.l.b16 %v240
    %v863 = vunpack.c.h.b16 %v240
    %v864 = vunpack.c.l.b16 %v241
    %v865 = vunpack.c.h.b16 %v241
    %v866 = vunpack.c.l.b16 %v242
    %v867 = vunpack.c.h.b16 %v242
    %v868 = vunpack.c.l.b16 %v243
    %v869 = vunpack.c.h.b16 %v243
    %v870 = vunpack.c.l.b16 %v244
    %v871 = vunpack.c.h.b16 %v244
    %v872 = vunpack.c.l.b16 %v245
    %v873 = vunpack.c.h.b16 %v245
    %v874 = vunpack.c.l.b16 %v246
    %v875 = vunpack.c.h.b16 %v246
    %v876 = vunpack.c.l.b16 %v247
    %v877 = vunpack.c.h.b16 %v247
    %v878 = vunpack.c.l.b16 %v248
    %v879 = vunpack.c.h.b16 %v248
    %v880 = vunpack.c.l.b16 %v249
    %v881 = vunpack.c.h.b16 %v249
    %v882 = vunpack.c.l.b16 %v250
    %v883 = vunpack.c.h.b16 %v250
    %v884 = vunpack.c.l.b16 %v251
    %v885 = vunpack.c.h.b16 %v251
    %v886 = vunpack.c.l.b16 %v252
    %v887 = vunpack.c.h.b16 %v252
    %v888 = vunpack.c.l.b16 %v253
    %v889 = vunpack.c.h.b16 %v253
    %v890 = vunpack.c.l.b16 %v254
    %v891 = vunpack.c.h.b16 %v254
    %v892 = vunpack.c.l.b16 %v255
    %v893 = vunpack.c.h.b16 %v255
    %v894 = vunpack.c.l.b16 %v256
    %v895 = vunpack.c.h.b16 %v256
    %v896 = vunpack.c.l.b16 %v257
    %v897 = vunpack.c.h.b16 %v257
    %v898 = vunpack.c.l.b16 %v258
    %v899 = vunpack.c.h.b16 %v258
    %v900 = vunpack.c.l.b16 %v259
    %v901 = vunpack.c.h.b16 %v259
    %v902 = vunpack.c.l.b16 %v260
    %v903 = vunpack.c.h.b16 %v260
    %v904 = vunpack.c.l.b16 %v261
    %v905 = vunpack.c.h.b16 %v261
    %v906 = vunpack.c.l.b16 %v262
    %v907 = vunpack.c.h.b16 %v262
    %v908 = vunpack.c.l.b16 %v263
    %v909 = vunpack.c.h.b16 %v263
    %v910 = vunpack.c.l.b16 %v264
    %v911 = vunpack.c.h.b16 %v264
    %v912 = vunpack.c.l.b16 %v265
    %v913 = vunpack.c.h.b16 %v265
    %v914 = vunpack.c.l.b16 %v266
    %v915 = vunpack.c.h.b16 %v266
    %v916 = vunpack.c.l.b16 %v267
    %v917 = vunpack.c.h.b16 %v267
    %v918 = vunpack.c.l.b16 %v268
    %v919 = vunpack.c.h.b16 %v268
    %v920 = vunpack.c.l.b16 %v269
    %v921 = vunpack.c.h.b16 %v269
    %v922 = vunpack.c.l.b16 %v270
    %v923 = vunpack.c.h.b16 %v270
    %v924 = vunpack.c.l.b16 %v271
    %v925 = vunpack.c.h.b16 %v271
    %v926 = vunpack.c.l.b16 %v272
    %v927 = vunpack.c.h.b16 %v272
    %v928 = vunpack.c.l.b16 %v273
    %v929 = vunpack.c.h.b16 %v273
    %v930 = vunpack.c.l.b16 %v274
    %v931 = vunpack.c.h.b16 %v274
    %v932 = vunpack.c.l.b16 %v275
    %v933 = vunpack.c.h.b16 %v275
    %v934 = vunpack.c.l.b16 %v276
    %v935 = vunpack.c.h.b16 %v276
    %v936 = vunpack.c.l.b16 %v277
    %v937 = vunpack.c.h.b16 %v277
    %v938 = vunpack.c.l.b16 %v278
    %v939 = vunpack.c.h.b16 %v278
    %v940 = vunpack.c.l.b16 %v279
    %v941 = vunpack.c.h.b16 %v279
    %v942 = vunpack.c.l.b16 %v280
    %v943 = vunpack.c.h.b16 %v280
    %v944 = vunpack.c.l.b16 %v281
    %v945 = vunpack.c.h.b16 %v281
    %v946 = vunpack.c.l.b16 %v282
    %v947 = vunpack.c.h.b16 %v282
    %v948 = vunpack.c.l.b16 %v283
    %v949 = vunpack.c.h.b16 %v283
    %v950 = vunpack.c.l.b16 %v284
    %v951 = vunpack.c.h.b16 %v284
    %v952 = vunpack.c.l.b16 %v285
    %v953 = vunpack.c.h.b16 %v285
    %v954 = vunpack.c.l.b16 %v286
    %v955 = vunpack.c.h.b16 %v286
    %v956 = vunpack.c.l.b16 %v287
    %v957 = vunpack.c.h.b16 %v287
    %v958 = vunpack.c.l.b16 %v288
    %v959 = vunpack.c.h.b16 %v288
    %v960 = vunpack.c.l.b16 %v289
    %v961 = vunpack.c.h.b16 %v289
    %v962 = vunpack.c.l.b16 %v290
    %v963 = vunpack.c.h.b16 %v290
    %v964 = vunpack.c.l.b16 %v291
    %v965 = vunpack.c.h.b16 %v291
    %v966 = vunpack.c.l.b16 %v292
    %v967 = vunpack.c.h.b16 %v292
    %v968 = vunpack.c.l.b16 %v293
    %v969 = vunpack.c.h.b16 %v293
    %v970 = vunpack.c.l.b16 %v294
    %v971 = vunpack.c.h.b16 %v294
    %v972 = vunpack.c.l.b16 %v295
    %v973 = vunpack.c.h.b16 %v295
    %v974 = vunpack.c.l.b16 %v296
    %v975 = vunpack.c.h.b16 %v296
    %v976 = vunpack.c.l.b16 %v297
    %v977 = vunpack.c.h.b16 %v297
    %v978 = vunpack.c.l.b16 %v298
    %v979 = vunpack.c.h.b16 %v298
    %v980 = vunpack.c.l.b16 %v299
    %v981 = vunpack.c.h.b16 %v299
    %v982 = vunpack.c.l.b16 %v300
    %v983 = vunpack.c.h.b16 %v300
    %v984 = vunpack.c.l.b16 %v301
    %v985 = vunpack.c.h.b16 %v301
    %v986 = vunpack.c.l.b16 %v302
    %v987 = vunpack.c.h.b16 %v302
    %v988 = vunpack.c.l.b16 %v303
    %v989 = vunpack.c.h.b16 %v303
    %v990 = vunpack.c.l.b16 %v304
    %v991 = vunpack.c.h.b16 %v304
    %v992 = vunpack.c.l.b16 %v305
    %v993 = vunpack.c.h.b16 %v305
    %v994 = vunpack.c.l.b16 %v306
    %v995 = vunpack.c.h.b16 %v306
    %v996 = vunpack.c.l.b16 %v307
    %v997 = vunpack.c.h.b16 %v307
    %v998 = vunpack.c.l.b16 %v308
    %v999 = vunpack.c.h.b16 %v308
    %v1000 = vunpack.c.l.b16 %v309
    %v1001 = vunpack.c.h.b16 %v309
    %v1002 = vunpack.c.l.b16 %v310
    %v1003 = vunpack.c.h.b16 %v310
    %v1004 = vunpack.c.l.b16 %v311
    %v1005 = vunpack.c.h.b16 %v311
    %v1006 = vunpack.c.l.b16 %v312
    %v1007 = vunpack.c.h.b16 %v312
    %v1008 = vunpack.c.l.b16 %v313
    %v1009 = vunpack.c.h.b16 %v313
    %v1010 = vunpack.c.l.b16 %v314
    %v1011 = vunpack.c.h.b16 %v314
    %v1012 = vunpack.c.l.b16 %v315
    %v1013 = vunpack.c.h.b16 %v315
    %v1014 = vunpack.c.l.b16 %v316
    %v1015 = vunpack.c.h.b16 %v316
    %v1016 = vunpack.c.l.b16 %v317
    %v1017 = vunpack.c.h.b16 %v317
    %v1018 = vunpack.c.l.b16 %v318
    %v1019 = vunpack.c.h.b16 %v318
    %v1020 = vunpack.c.l.b16 %v319
    %v1021 = vunpack.c.h.b16 %v319
    %v1022 = vunpack.c.l.b16 %v320
    %v1023 = vunpack.c.h.b16 %v320
    %v1024 = vunpack.c.l.b16 %v321
    %v1025 = vunpack.c.h.b16 %v321
    %v1026 = vunpack.c.l.b16 %v322
    %v1027 = vunpack.c.h.b16 %v322
    %v1028 = vunpack.c.l.b16 %v323
    %v1029 = vunpack.c.h.b16 %v323
    %v1030 = vunpack.c.l.b16 %v324
    %v1031 = vunpack.c.h.b16 %v324
    %v1032 = vunpack.c.l.b16 %v325
    %v1033 = vunpack.c.h.b16 %v325
    %v1034 = vunpack.c.l.b16 %v326
    %v1035 = vunpack.c.h.b16 %v326
    %v1036 = vunpack.c.l.b16 %v327
    %v1037 = vunpack.c.h.b16 %v327
    %v1038 = vunpack.c.l.b16 %v328
    %v1039 = vunpack.c.h.b16 %v328
    %v1040 = vunpack.c.l.b16 %v329
    %v1041 = vunpack.c.h.b16 %v329
    %v1042 = vunpack.c.l.b16 %v330
    %v1043 = vunpack.c.h.b16 %v330
    %v1044 = vunpack.c.l.b16 %v331
    %v1045 = vunpack.c.h.b16 %v331
    %v1046 = vunpack.c.l.b16 %v332
    %v1047 = vunpack.c.h.b16 %v332
    %v1048 = vunpack.c.l.b16 %v333
    %v1049 = vunpack.c.h.b16 %v333
    %v1050 = vunpack.c.l.b16 %v334
    %v1051 = vunpack.c.h.b16 %v334
    %v1052 = vunpack.c.l.b16 %v335
    %v1053 = vunpack.c.h.b16 %v335
    %v1054 = vunpack.c.l.b16 %v336
    %v1055 = vunpack.c.h.b16 %v336
    %v1056 = vunpack.c.l.b16 %v337
    %v1057 = vunpack.c.h.b16 %v337
    %v1058 = vunpack.c.l.b16 %v338
    %v1059 = vunpack.c.h.b16 %v338
    %v1060 = vunpack.c.l.b16 %v339
    %v1061 = vunpack.c.h.b16 %v339
    %v1062 = vunpack.c.l.b16 %v340
    %v1063 = vunpack.c.h.b16 %v340
    %v1064 = vunpack.c.l.b16 %v341
    %v1065 = vunpack.c.h.b16 %v341
    %v1066 = vunpack.c.l.b16 %v342
    %v1067 = vunpack.c.h.b16 %v342
    %v1068 = vunpack.c.l.b16 %v343
    %v1069 = vunpack.c.h.b16 %v343
    %v1070 = vunpack.c.l.b16 %v344
    %v1071 = vunpack.c.h.b16 %v344
    %v1072 = vunpack.c.l.b16 %v345
    %v1073 = vunpack.c.h.b16 %v345
    %v1074 = vunpack.c.l.b16 %v346
    %v1075 = vunpack.c.h.b16 %v346
    %v1076 = vunpack.c.l.b16 %v347
    %v1077 = vunpack.c.h.b16 %v347
    %v1078 = vunpack.c.l.b16 %v348
    %v1079 = vunpack.c.h.b16 %v348
    %v1080 = vunpack.c.l.b16 %v349
    %v1081 = vunpack.c.h.b16 %v349
    %v1082 = vunpack.c.l.b16 %v350
    %v1083 = vunpack.c.h.b16 %v350
    %v1084 = vunpack.c.l.b16 %v351
    %v1085 = vunpack.c.h.b16 %v351
    %v1086 = vunpack.c.l.b16 %v352
    %v1087 = vunpack.c.h.b16 %v352
    %v1088 = vunpack.c.l.b16 %v353
    %v1089 = vunpack.c.h.b16 %v353
    %v1090 = vunpack.c.l.b16 %v354
    %v1091 = vunpack.c.h.b16 %v354
    %v1092 = vunpack.c.l.b16 %v355
    %v1093 = vunpack.c.h.b16 %v355
    %v1094 = vunpack.c.l.b16 %v356
    %v1095 = vunpack.c.h.b16 %v356
    %v1096 = vunpack.c.l.b16 %v357
    %v1097 = vunpack.c.h.b16 %v357
    %v1098 = vunpack.c.l.b16 %v358
    %v1099 = vunpack.c.h.b16 %v358
    %v1100 = vunpack.c.l.b16 %v359
    %v1101 = vunpack.c.h.b16 %v359
    %v1102 = vunpack.c.l.b16 %v360
    %v1103 = vunpack.c.h.b16 %v360
    %v1104 = vunpack.c.l.b16 %v361
    %v1105 = vunpack.c.h.b16 %v361
    %v1106 = vunpack.c.l.b16 %v362
    %v1107 = vunpack.c.h.b16 %v362
    %v1108 = vunpack.c.l.b16 %v363
    %v1109 = vunpack.c.h.b16 %v363
    %v1110 = vunpack.c.l.b16 %v364
    %v1111 = vunpack.c.h.b16 %v364
    %v1112 = vunpack.c.l.b16 %v365
    %v1113 = vunpack.c.h.b16 %v365
    %v1114 = vunpack.c.l.b16 %v366
    %v1115 = vunpack.c.h.b16 %v366
    %v1116 = vunpack.c.l.b16 %v367
    %v1117 = vunpack.c.h.b16 %v367
    %v1118 = vunpack.c.l.b16 %v368
    %v1119 = vunpack.c.h.b16 %v368
    %v1120 = vunpack.c.l.b16 %v369
    %v1121 = vunpack.c.h.b16 %v369
    %v1122 = vunpack.c.l.b16 %v370
    %v1123 = vunpack.c.h.b16 %v370
    %v1124 = vunpack.c.l.b16 %v371
    %v1125 = vunpack.c.h.b16 %v371
    %v1126 = vunpack.c.l.b16 %v372
    %v1127 = vunpack.c.h.b16 %v372
    %v1128 = vunpack.c.l.b16 %v373
    %v1129 = vunpack.c.h.b16 %v373
    %v1130 = vunpack.c.l.b16 %v374
    %v1131 = vunpack.c.h.b16 %v374
    %v1132 = vunpack.c.l.b16 %v375
    %v1133 = vunpack.c.h.b16 %v375
    %v1134 = vunpack.c.l.b16 %v376
    %v1135 = vunpack.c.h.b16 %v376
    %v1136 = vunpack.c.l.b16 %v377
    %v1137 = vunpack.c.h.b16 %v377
    %v1138 = vunpack.c.l.b16 %v378
    %v1139 = vunpack.c.h.b16 %v378
    %v1140 = vunpack.c.l.b16 %v379
    %v1141 = vunpack.c.h.b16 %v379
    %v1142 = vunpack.c.l.b16 %v380
    %v1143 = vunpack.c.h.b16 %v380
    %v1144 = vunpack.c.l.b16 %v381
    %v1145 = vunpack.c.h.b16 %v381
    %v1146 = vunpack.c.l.b16 %v382
    %v1147 = vunpack.c.h.b16 %v382
    %v1148 = vunpack.c.l.b16 %v383
    %v1149 = vunpack.c.h.b16 %v383
    %v1150 = vunpack.c.l.b16 %v384
    %v1151 = vunpack.c.h.b16 %v384
    %v1152 = vunpack.c.l.b16 %v385
    %v1153 = vunpack.c.h.b16 %v385
    %v1154 = vunpack.c.l.b16 %v386
    %v1155 = vunpack.c.h.b16 %v386
    %v1156 = vunpack.c.l.b16 %v387
    %v1157 = vunpack.c.h.b16 %v387
    %v1158 = vunpack.c.l.b16 %v388
    %v1159 = vunpack.c.h.b16 %v388
    %v1160 = vunpack.c.l.b16 %v389
    %v1161 = vunpack.c.h.b16 %v389
    %v1162 = vpack.c.b16 %v666, %v662
    %v1163 = vpack.c.b16 %v667, %v663
    %v1164 = vpack.c.b16 %v668, %v664
    %v1165 = vpack.c.b16 %v669, %v665
    %v1166 = vpack.c.b16 %v674, %v670
    %v1167 = vpack.c.b16 %v675, %v671
    %v1168 = vpack.c.b16 %v676, %v672
    %v1169 = vpack.c.b16 %v677, %v673
    %v1170 = vpack.c.b16 %v682, %v678
    %v1171 = vpack.c.b16 %v683, %v679
    %v1172 = vpack.c.b16 %v684, %v680
    %v1173 = vpack.c.b16 %v685, %v681
    %v1174 = vpack.c.b16 %v690, %v686
    %v1175 = vpack.c.b16 %v691, %v687
    %v1176 = vpack.c.b16 %v692, %v688
    %v1177 = vpack.c.b16 %v693, %v689
    %v1178 = vpack.c.b16 %v698, %v694
    %v1179 = vpack.c.b16 %v699, %v695
    %v1180 = vpack.c.b16 %v700, %v696
    %v1181 = vpack.c.b16 %v701, %v697
    %v1182 = vpack.c.b16 %v706, %v702
    %v1183 = vpack.c.b16 %v707, %v703
    %v1184 = vpack.c.b16 %v708, %v704
    %v1185 = vpack.c.b16 %v709, %v705
    %v1186 = vpack.c.b16 %v714, %v710
    %v1187 = vpack.c.b16 %v715, %v711
    %v1188 = vpack.c.b16 %v716, %v712
    %v1189 = vpack.c.b16 %v717, %v713
    %v1190 = vpack.c.b16 %v722, %v718
    %v1191 = vpack.c.b16 %v723, %v719
    %v1192 = vpack.c.b16 %v724, %v720
    %v1193 = vpack.c.b16 %v725, %v721
    %v1194 = vpack.c.b16 %v730, %v726
    %v1195 = vpack.c.b16 %v731, %v727
    %v1196 = vpack.c.b16 %v732, %v728
    %v1197 = vpack.c.b16 %v733, %v729
    %v1198 = vpack.c.b16 %v738, %v734
    %v1199 = vpack.c.b16 %v739, %v735
    %v1200 = vpack.c.b16 %v740, %v736
    %v1201 = vpack.c.b16 %v741, %v737
    %v1202 = vpack.c.b16 %v746, %v742
    %v1203 = vpack.c.b16 %v747, %v743
    %v1204 = vpack.c.b16 %v748, %v744
    %v1205 = vpack.c.b16 %v749, %v745
    %v1206 = vpack.c.b16 %v754, %v750
    %v1207 = vpack.c.b16 %v755, %v751
    %v1208 = vpack.c.b16 %v756, %v752
    %v1209 = vpack.c.b16 %v757, %v753
    %v1210 = vpack.c.b16 %v762, %v758
    %v1211 = vpack.c.b16 %v763, %v759
    %v1212 = vpack.c.b16 %v764, %v760
    %v1213 = vpack.c.b16 %v765, %v761
    %v1214 = vpack.c.b16 %v770, %v766
    %v1215 = vpack.c.b16 %v771, %v767
    %v1216 = vpack.c.b16 %v772, %v768
    %v1217 = vpack.c.b16 %v773, %v769
    %v1218 = vpack.c.b16 %v778, %v774
    %v1219 = vpack.c.b16 %v779, %v775
    %v1220 = vpack.c.b16 %v780, %v776
    %v1221 = vpack.c.b16 %v781, %v777
    %v1222 = vpack.c.b16 %v786, %v782
    %v1223 = vpack.c.b16 %v787, %v783
    %v1224 = vpack.c.b16 %v788, %v784
    %v1225 = vpack.c.b16 %v789, %v785
    %v1226 = vpack.c.b16 %v794, %v790
    %v1227 = vpack.c.b16 %v795, %v791
    %v1228 = vpack.c.b16 %v796, %v792
    %v1229 = vpack.c.b16 %v797, %v793
    %v1230 = vpack.c.b16 %v802, %v798
    %v1231 = vpack.c.b16 %v803, %v799
    %v1232 = vpack.c.b16 %v804, %v800
    %v1233 = vpack.c.b16 %v805, %v801
    %v1234 = vpack.c.b16 %v810, %v806
    %v1235 = vpack.c.b16 %v811, %v807
    %v1236 = vpack.c.b16 %v812, %v808
    %v1237 = vpack.c.b16 %v813, %v809
    %v1238 = vpack.c.b16 %v818, %v814
    %v1239 = vpack.c.b16 %v819, %v815
    %v1240 = vpack.c.b16 %v820, %v816
    %v1241 = vpack.c.b16 %v821, %v817
    %v1242 = vpack.c.b16 %v826, %v822
    %v1243 = vpack.c.b16 %v827, %v823
    %v1244 = vpack.c.b16 %v828, %v824
    %v1245 = vpack.c.b16 %v829, %v825
    %v1246 = vpack.c.b16 %v834, %v830
    %v1247 = vpack.c.b16 %v835, %v831
    %v1248 = vpack.c.b16 %v836, %v832
    %v1249 = vpack.c.b16 %v837, %v833
    %v1250 = vpack.c.b16 %v842, %v838
    %v1251 = vpack.c.b16 %v843, %v839
    %v1252 = vpack.c.b16 %v844, %v840
    %v1253 = vpack.c.b16 %v845, %v841
    %v1254 = vpack.c.b16 %v850, %v846
    %v1255 = vpack.c.b16 %v851, %v847
    %v1256 = vpack.c.b16 %v852, %v848
    %v1257 = vpack.c.b16 %v853, %v849
    %v1258 = vpack.c.b16 %v858, %v854
    %v1259 = vpack.c.b16 %v859, %v855
    %v1260 = vpack.c.b16 %v860, %v856
    %v1261 = vpack.c.b16 %v861, %v857
    %v1262 = vpack.c.b16 %v866, %v862
    %v1263 = vpack.c.b16 %v867, %v863
    %v1264 = vpack.c.b16 %v868, %v864
    %v1265 = vpack.c.b16 %v869, %v865
    %v1266 = vpack.c.b16 %v874, %v870
    %v1267 = vpack.c.b16 %v875, %v871
    %v1268 = vpack.c.b16 %v876, %v872
    %v1269 = vpack.c.b16 %v877, %v873
    %v1270 = vpack.c.b16 %v882, %v878
    %v1271 = vpack.c.b16 %v883, %v879
    %v1272 = vpack.c.b16 %v884, %v880
    %v1273 = vpack.c.b16 %v885, %v881
    %v1274 = vpack.c.b16 %v890, %v886
    %v1275 = vpack.c.b16 %v891, %v887
    %v1276 = vpack.c.b16 %v892, %v888
    %v1277 = vpack.c.b16 %v893, %v889
    %v1278 = vpack.c.b16 %v898, %v894
    %v1279 = vpack.c.b16 %v899, %v895
    %v1280 = vpack.c.b16 %v900, %v896
    %v1281 = vpack.c.b16 %v901, %v897
    %v1282 = vpack.c.b16 %v906, %v902
    %v1283 = vpack.c.b16 %v907, %v903
    %v1284 = vpack.c.b16 %v908, %v904
    %v1285 = vpack.c.b16 %v909, %v905
    %v1286 = vpack.c.b16 %v914, %v910
    %v1287 = vpack.c.b16 %v915, %v911
    %v1288 = vpack.c.b16 %v916, %v912
    %v1289 = vpack.c.b16 %v917, %v913
    %v1290 = vpack.c.b16 %v922, %v918
    %v1291 = vpack.c.b16 %v923, %v919
    %v1292 = vpack.c.b16 %v924, %v920
    %v1293 = vpack.c.b16 %v925, %v921
    %v1294 = vpack.c.b16 %v930, %v926
    %v1295 = vpack.c.b16 %v931, %v927
    %v1296 = vpack.c.b16 %v932, %v928
    %v1297 = vpack.c.b16 %v933, %v929
    %v1298 = vpack.c.b16 %v938, %v934
    %v1299 = vpack.c.b16 %v939, %v935
    %v1300 = vpack.c.b16 %v940, %v936
    %v1301 = vpack.c.b16 %v941, %v937
    %v1302 = vpack.c.b16 %v946, %v942
    %v1303 = vpack.c.b16 %v947, %v943
    %v1304 = vpack.c.b16 %v948, %v944
    %v1305 = vpack.c.b16 %v949, %v945
    %v1306 = vpack.c.b16 %v954, %v950
    %v1307 = vpack.c.b16 %v955, %v951
    %v1308 = vpack.c.b16 %v956, %v952
    %v1309 = vpack.c.b16 %v957, %v953
    %v1310 = vpack.c.b16 %v962, %v958
    %v1311 = vpack.c.b16 %v963, %v959
    %v1312 = vpack.c.b16 %v964, %v960
    %v1313 = vpack.c.b16 %v965, %v961
    %v1314 = vpack.c.b16 %v970, %v966
    %v1315 = vpack.c.b16 %v971, %v967
    %v1316 = vpack.c.b16 %v972, %v968
    %v1317 = vpack.c.b16 %v973, %v969
    %v1318 = vpack.c.b16 %v978, %v974
    %v1319 = vpack.c.b16 %v979, %v975
    %v1320 = vpack.c.b16 %v980, %v976
    %v1321 = vpack.c.b16 %v981, %v977
    %v1322 = vpack.c.b16 %v986, %v982
    %v1323 = vpack.c.b16 %v987, %v983
    %v1324 = vpack.c.b16 %v988, %v984
    %v1325 = vpack.c.b16 %v989, %v985
    %v1326 = vpack.c.b16 %v994, %v990
    %v1327 = vpack.c.b16 %v995, %v991
    %v1328 = vpack.c.b16 %v996, %v992
    %v1329 = vpack.c.b16 %v997, %v993
    %v1330 = vpack.c.b16 %v1002, %v998
    %v1331 = vpack.c.b16 %v1003, %v999
    %v1332 = vpack.c.b16 %v1004, %v1000
    %v1333 = vpack.c.b16 %v1005, %v1001
    %v1334 = vpack.c.b16 %v1010, %v1006
    %v1335 = vpack.c.b16 %v1011, %v1007
    %v1336 = vpack.c.b16 %v1012, %v1008
    %v1337 = vpack.c.b16 %v1013, %v1009
    %v1338 = vpack.c.b16 %v1018, %v1014
    %v1339 = vpack.c.b16 %v1019, %v1015
    %v1340 = vpack.c.b16 %v1020, %v1016
    %v1341 = vpack.c.b16 %v1021, %v1017
    %v1342 = vpack.c.b16 %v1026, %v1022
    %v1343 = vpack.c.b16 %v1027, %v1023
    %v1344 = vpack.c.b16 %v1028, %v1024
    %v1345 = vpack.c.b16 %v1029, %v1025
    %v1346 = vpack.c.b16 %v1034, %v1030
    %v1347 = vpack.c.b16 %v1035, %v1031
    %v1348 = vpack.c.b16 %v1036, %v1032
    %v1349 = vpack.c.b16 %v1037, %v1033
    %v1350 = vpack.c.b16 %v1042, %v1038
    %v1351 = vpack.c.b16 %v1043, %v1039
    %v1352 = vpack.c.b16 %v1044, %v1040
    %v1353 = vpack.c.b16 %v1045, %v1041
    %v1354 = vpack.c.b16 %v1050, %v1046
    %v1355 = vpack.c.b16 %v1051, %v1047
    %v1356 = vpack.c.b16 %v1052, %v1048
    %v1357 = vpack.c.b16 %v1053, %v1049
    %v1358 = vpack.c.b16 %v1058, %v1054
    %v1359 = vpack.c.b16 %v1059, %v1055
    %v1360 = vpack.c.b16 %v1060, %v1056
    %v1361 = vpack.c.b16 %v1061, %v1057
    %v1362 = vpack.c.b16 %v1066, %v1062
    %v1363 = vpack.c.b16 %v1067, %v1063
    %v1364 = vpack.c.b16 %v1068, %v1064
    %v1365 = vpack.c.b16 %v1069, %v1065
    %v1366 = vpack.c.b16 %v1074, %v1070
    %v1367 = vpack.c.b16 %v1075, %v1071
    %v1368 = vpack.c.b16 %v1076, %v1072
    %v1369 = vpack.c.b16 %v1077, %v1073
    %v1370 = vpack.c.b16 %v1082, %v1078
    %v1371 = vpack.c.b16 %v1083, %v1079
    %v1372 = vpack.c.b16 %v1084, %v1080
    %v1373 = vpack.c.b16 %v1085, %v1081
    %v1374 = vpack.c.b16 %v1090, %v1086
    %v1375 = vpack.c.b16 %v1091, %v1087
    %v1376 = vpack.c.b16 %v1092, %v1088
    %v1377 = vpack.c.b16 %v1093, %v1089
    %v1378 = vpack.c.b16 %v1098, %v1094
    %v1379 = vpack.c.b16 %v1099, %v1095
    %v1380 = vpack.c.b16 %v1100, %v1096
    %v1381 = vpack.c.b16 %v1101, %v1097
    %v1382 = vpack.c.b16 %v1106, %v1102
    %v1383 = vpack.c.b16 %v1107, %v1103
    %v1384 = vpack.c.b16 %v1108, %v1104
    %v1385 = vpack.c.b16 %v1109, %v1105
    %v1386 = vpack.c.b16 %v1114, %v1110
    %v1387 = vpack.c.b16 %v1115, %v1111
    %v1388 = vpack.c.b16 %v1116, %v1112
    %v1389 = vpack.c.b16 %v1117, %v1113
    %v1390 = vpack.c.b16 %v1122, %v1118
    %v1391 = vpack.c.b16 %v1123, %v1119
    %v1392 = vpack.c.b16 %v1124, %v1120
    %v1393 = vpack.c.b16 %v1125, %v1121
    %v1394 = vpack.c.b16 %v1130, %v1126
    %v1395 = vpack.c.b16 %v1131, %v1127
    %v1396 = vpack.c.b16 %v1132, %v1128
    %v1397 = vpack.c.b16 %v1133, %v1129
    %v1398 = vpack.c.b16 %v1138, %v1134
    %v1399 = vpack.c.b16 %v1139, %v1135
    %v1400 = vpack.c.b16 %v1140, %v1136
    %v1401 = vpack.c.b16 %v1141, %v1137
    %v1402 = vpack.c.b16 %v1146, %v1142
    %v1403 = vpack.c.b16 %v1147, %v1143
    %v1404 = vpack.c.b16 %v1148, %v1144
    %v1405 = vpack.c.b16 %v1149, %v1145
    %v1406 = vpack.c.b16 %v1154, %v1150
    %v1407 = vpack.c.b16 %v1155, %v1151
    %v1408 = vpack.c.b16 %v1156, %v1152
    %v1409 = vpack.c.b16 %v1157, %v1153
    %v1410 = vpack.c.b16 %v1158, %v1158
    %v1411 = vpack.c.b16 %v1159, %v1159
    %v1412 = vpack.c.b16 %v1160, %v1160
    %v1413 = vpack.c.b16 %v1161, %v1161
    %vm1662 = vcmask 850944
    %v1664 = vsel %vm1662, %v139, 0
    %vm1666 = vcmask 1043456
    %v1668 = vsel %vm1666, %v1410, 0
    %v1671 = vsel %vm1666, %v1411, 0
    %v1674 = vsel %vm1666, %v1412, 0
    %v1677 = vsel %vm1666, %v1413, 0
    %1679 = vmatprep.subr.bf16.mxu0 %v1163
    %1680 = vmatpush1.bf16.msra.mxu0 %v1162
    %1681 = vmatprep.subr.bf16.mxu0 %v1167
    %1682 = vmatpush1.bf16.msra.mxu0 %v1166
    %1683 = vmatprep.subr.bf16.mxu0 %v1171
    %1684 = vmatpush1.bf16.msra.mxu0 %v1170
    %1685 = vmatprep.subr.bf16.mxu0 %v1175
    %1686 = vmatpush1.bf16.msra.mxu0 %v1174
    %1687 = vmatprep.subr.bf16.mxu0 %v1179
    %1688 = vmatpush1.bf16.msra.mxu0 %v1178
    %1689 = vmatprep.subr.bf16.mxu0 %v1183
    %1690 = vmatpush1.bf16.msra.mxu0 %v1182
    %1691 = vmatprep.subr.bf16.mxu0 %v1187
    %1692 = vmatpush1.bf16.msra.mxu0 %v1186
    %1693 = vmatprep.subr.bf16.mxu0 %v1191
    %1694 = vmatpush1.bf16.msra.mxu0 %v1190
    %1695 = vmatprep.subr.bf16.mxu0 %v1195
    %1696 = vmatpush1.bf16.msra.mxu0 %v1194
    %1697 = vmatprep.subr.bf16.mxu0 %v1199
    %1698 = vmatpush1.bf16.msra.mxu0 %v1198
    %1699 = vmatprep.subr.bf16.mxu0 %v1203
    %1700 = vmatpush1.bf16.msra.mxu0 %v1202
    %1701 = vmatprep.subr.bf16.mxu0 %v1207
    %1702 = vmatpush1.bf16.msra.mxu0 %v1206
    %1703 = vmatprep.subr.bf16.mxu0 %v1211
    %1704 = vmatpush1.bf16.msra.mxu0 %v1210
    %1705 = vmatprep.subr.bf16.mxu0 %v1215
    %1706 = vmatpush1.bf16.msra.mxu0 %v1214
    %1707 = vmatprep.subr.bf16.mxu0 %v1219
    %1708 = vmatpush1.bf16.msra.mxu0 %v1218
    %1709 = vmatprep.subr.bf16.mxu0 %v1223
    %1710 = vmatpush1.bf16.msra.mxu0 %v1222
    %1711 = vmatprep.mubr.bf16.mxu0 %v133
    %1712 = vmatmul.mubr.bf16.gmra.mrb[0].mxu0 %v132
    %v1713 = vpop.f32.mrb[0].mxu0
    %v1714 = vadd.f32 %v395, %v1713
    %v1715 = vpop.f32.mrb[0].mxu0
    %v1716 = vadd.f32 %v399, %v1715
    %v1717 = vpop.f32.mrb[0].mxu0
    %v1718 = vpop.f32.mrb[0].mxu0
    %1719 = vdwg.mxu0
    %1720 = vmatprep.subr.bf16.mxu0 %v1227
    %1721 = vmatpush1.bf16.msra.mxu0 %v1226
    %1722 = vmatprep.subr.bf16.mxu0 %v1231
    %1723 = vmatpush1.bf16.msra.mxu0 %v1230
    %1724 = vmatprep.subr.bf16.mxu0 %v1235
    %1725 = vmatpush1.bf16.msra.mxu0 %v1234
    %1726 = vmatprep.subr.bf16.mxu0 %v1239
    %1727 = vmatpush1.bf16.msra.mxu0 %v1238
    %1728 = vmatprep.subr.bf16.mxu0 %v1243
    %1729 = vmatpush1.bf16.msra.mxu0 %v1242
    %1730 = vmatprep.subr.bf16.mxu0 %v1247
    %1731 = vmatpush1.bf16.msra.mxu0 %v1246
    %1732 = vmatprep.subr.bf16.mxu0 %v1251
    %1733 = vmatpush1.bf16.msra.mxu0 %v1250
    %1734 = vmatprep.subr.bf16.mxu0 %v1255
    %1735 = vmatpush1.bf16.msra.mxu0 %v1254
    %1736 = vmatprep.subr.bf16.mxu0 %v1259
    %1737 = vmatpush1.bf16.msra.mxu0 %v1258
    %1738 = vmatprep.subr.bf16.mxu0 %v1263
    %1739 = vmatpush1.bf16.msra.mxu0 %v1262
    %1740 = vmatprep.subr.bf16.mxu0 %v1267
    %1741 = vmatpush1.bf16.msra.mxu0 %v1266
    %1742 = vmatprep.subr.bf16.mxu0 %v1271
    %1743 = vmatpush1.bf16.msra.mxu0 %v1270
    %1744 = vmatprep.subr.bf16.mxu0 %v1275
    %1745 = vmatpush1.bf16.msra.mxu0 %v1274
    %1746 = vmatprep.subr.bf16.mxu0 %v1279
    %1747 = vmatpush1.bf16.msra.mxu0 %v1278
    %1748 = vmatprep.subr.bf16.mxu0 %v1283
    %1749 = vmatpush1.bf16.msra.mxu0 %v1282
    %1750 = vmatprep.subr.bf16.mxu0 %v1287
    %1751 = vmatpush1.bf16.msra.mxu0 %v1286
    %1752 = vmatprep.mubr.bf16.mxu0 %v135
    %1753 = vmatmul.mubr.bf16.gmra.mrb[0].mxu0 %v134
    %v1754 = vpop.f32.mrb[0].mxu0
    %v1755 = vadd.f32 %v1714, %v1754
    %v1756 = vpop.f32.mrb[0].mxu0
    %v1757 = vadd.f32 %v1716, %v1756
    %v1758 = vpop.f32.mrb[0].mxu0
    %v1759 = vpop.f32.mrb[0].mxu0
    %1760 = vdwg.mxu0
    %1761 = vmatprep.subr.bf16.mxu0 %v1291
    %1762 = vmatpush1.bf16.msra.mxu0 %v1290
    %1763 = vmatprep.subr.bf16.mxu0 %v1295
    %1764 = vmatpush1.bf16.msra.mxu0 %v1294
    %1765 = vmatprep.subr.bf16.mxu0 %v1299
    %1766 = vmatpush1.bf16.msra.mxu0 %v1298
    %1767 = vmatprep.subr.bf16.mxu0 %v1303
    %1768 = vmatpush1.bf16.msra.mxu0 %v1302
    %1769 = vmatprep.subr.bf16.mxu0 %v1307
    %1770 = vmatpush1.bf16.msra.mxu0 %v1306
    %1771 = vmatprep.subr.bf16.mxu0 %v1311
    %1772 = vmatpush1.bf16.msra.mxu0 %v1310
    %1773 = vmatprep.subr.bf16.mxu0 %v1315
    %1774 = vmatpush1.bf16.msra.mxu0 %v1314
    %1775 = vmatprep.subr.bf16.mxu0 %v1319
    %1776 = vmatpush1.bf16.msra.mxu0 %v1318
    %1777 = vmatprep.subr.bf16.mxu0 %v1323
    %1778 = vmatpush1.bf16.msra.mxu0 %v1322
    %1779 = vmatprep.subr.bf16.mxu0 %v1327
    %1780 = vmatpush1.bf16.msra.mxu0 %v1326
    %1781 = vmatprep.subr.bf16.mxu0 %v1331
    %1782 = vmatpush1.bf16.msra.mxu0 %v1330
    %1783 = vmatprep.subr.bf16.mxu0 %v1335
    %1784 = vmatpush1.bf16.msra.mxu0 %v1334
    %1785 = vmatprep.subr.bf16.mxu0 %v1339
    %1786 = vmatpush1.bf16.msra.mxu0 %v1338
    %1787 = vmatprep.subr.bf16.mxu0 %v1343
    %1788 = vmatpush1.bf16.msra.mxu0 %v1342
    %1789 = vmatprep.subr.bf16.mxu0 %v1347
    %1790 = vmatpush1.bf16.msra.mxu0 %v1346
    %1791 = vmatprep.subr.bf16.mxu0 %v1351
    %1792 = vmatpush1.bf16.msra.mxu0 %v1350
    %1793 = vmatprep.mubr.bf16.mxu0 %v137
    %1794 = vmatmul.mubr.bf16.gmra.mrb[0].mxu0 %v136
    %v1795 = vpop.f32.mrb[0].mxu0
    %v1796 = vadd.f32 %v1755, %v1795
    %v1797 = vpop.f32.mrb[0].mxu0
    %v1798 = vadd.f32 %v1757, %v1797
    %v1799 = vpop.f32.mrb[0].mxu0
    %v1800 = vpop.f32.mrb[0].mxu0
    %1801 = vdwg.mxu0
    %1802 = vmatprep.subr.bf16.mxu0 %v1355
    %1803 = vmatpush1.bf16.msra.mxu0 %v1354
    %1804 = vmatprep.subr.bf16.mxu0 %v1359
    %1805 = vmatpush1.bf16.msra.mxu0 %v1358
    %1806 = vmatprep.subr.bf16.mxu0 %v1363
    %1807 = vmatpush1.bf16.msra.mxu0 %v1362
    %1808 = vmatprep.subr.bf16.mxu0 %v1367
    %1809 = vmatpush1.bf16.msra.mxu0 %v1366
    %1810 = vmatprep.subr.bf16.mxu0 %v1371
    %1811 = vmatpush1.bf16.msra.mxu0 %v1370
    %1812 = vmatprep.subr.bf16.mxu0 %v1375
    %1813 = vmatpush1.bf16.msra.mxu0 %v1374
    %1814 = vmatprep.subr.bf16.mxu0 %v1379
    %1815 = vmatpush1.bf16.msra.mxu0 %v1378
    %1816 = vmatprep.subr.bf16.mxu0 %v1383
    %1817 = vmatpush1.bf16.msra.mxu0 %v1382
    %1818 = vmatprep.subr.bf16.mxu0 %v1387
    %1819 = vmatpush1.bf16.msra.mxu0 %v1386
    %1820 = vmatprep.subr.bf16.mxu0 %v1391
    %1821 = vmatpush1.bf16.msra.mxu0 %v1390
    %1822 = vmatprep.subr.bf16.mxu0 %v1395
    %1823 = vmatpush1.bf16.msra.mxu0 %v1394
    %1824 = vmatprep.subr.bf16.mxu0 %v1399
    %1825 = vmatpush1.bf16.msra.mxu0 %v1398
    %1826 = vmatprep.subr.bf16.mxu0 %v1403
    %1827 = vmatpush1.bf16.msra.mxu0 %v1402
    %1828 = vmatprep.subr.bf16.mxu0 %v1407
    %1829 = vmatpush1.bf16.msra.mxu0 %v1406
    %1830 = vmatprep.subr.bf16.mxu0 %v1671
    %1831 = vmatpush1.bf16.msra.mxu0 %v1668
    %1832 = vmatprep.subr.bf16.mxu0 0
    %1833 = vmatpush1.bf16.msra.mxu0 0
    %1834 = vmatprep.mubr.bf16.mxu0 %v1664
    %1835 = vmatmul.mubr.bf16.gmra.mrb[0].mxu0 %v138
    %v1836 = vpop.f32.mrb[0].mxu0
    %v1837 = vadd.f32 %v1796, %v1836
    %v1838 = vpop.f32.mrb[0].mxu0
    %v1839 = vadd.f32 %v1798, %v1838
    %v1840 = vpop.f32.mrb[0].mxu0
    %v1841 = vpop.f32.mrb[0].mxu0
    %1842 = vdwg.mxu0
    %1843 = vmatprep.subr.bf16.mxu0 %v1165
    %1844 = vmatpush1.bf16.msra.mxu0 %v1164
    %1845 = vmatprep.subr.bf16.mxu0 %v1169
    %1846 = vmatpush1.bf16.msra.mxu0 %v1168
    %1847 = vmatprep.subr.bf16.mxu0 %v1173
    %1848 = vmatpush1.bf16.msra.mxu0 %v1172
    %1849 = vmatprep.subr.bf16.mxu0 %v1177
    %1850 = vmatpush1.bf16.msra.mxu0 %v1176
    %1851 = vmatprep.subr.bf16.mxu0 %v1181
    %1852 = vmatpush1.bf16.msra.mxu0 %v1180
    %1853 = vmatprep.subr.bf16.mxu0 %v1185
    %1854 = vmatpush1.bf16.msra.mxu0 %v1184
    %1855 = vmatprep.subr.bf16.mxu0 %v1189
    %1856 = vmatpush1.bf16.msra.mxu0 %v1188
    %1857 = vmatprep.subr.bf16.mxu0 %v1193
    %1858 = vmatpush1.bf16.msra.mxu0 %v1192
    %1859 = vmatprep.subr.bf16.mxu0 %v1197
    %1860 = vmatpush1.bf16.msra.mxu0 %v1196
    %1861 = vmatprep.subr.bf16.mxu0 %v1201
    %1862 = vmatpush1.bf16.msra.mxu0 %v1200
    %1863 = vmatprep.subr.bf16.mxu0 %v1205
    %1864 = vmatpush1.bf16.msra.mxu0 %v1204
    %1865 = vmatprep.subr.bf16.mxu0 %v1209
    %1866 = vmatpush1.bf16.msra.mxu0 %v1208
    %1867 = vmatprep.subr.bf16.mxu0 %v1213
    %1868 = vmatpush1.bf16.msra.mxu0 %v1212
    %1869 = vmatprep.subr.bf16.mxu0 %v1217
    %1870 = vmatpush1.bf16.msra.mxu0 %v1216
    %1871 = vmatprep.subr.bf16.mxu0 %v1221
    %1872 = vmatpush1.bf16.msra.mxu0 %v1220
    %1873 = vmatprep.subr.bf16.mxu0 %v1225
    %1874 = vmatpush1.bf16.msra.mxu0 %v1224
    %1875 = vmatprep.mubr.bf16.mxu0 %v133
    %1876 = vmatmul.mubr.bf16.gmra.mrb[0].mxu0 %v132
    %v1877 = vpop.f32.mrb[0].mxu0
    %v1878 = vadd.f32 %v403, %v1877
    %v1879 = vpop.f32.mrb[0].mxu0
    %v1880 = vadd.f32 %v407, %v1879
    %v1881 = vpop.f32.mrb[0].mxu0
    %v1882 = vpop.f32.mrb[0].mxu0
    %1883 = vdwg.mxu0
    %1884 = vmatprep.subr.bf16.mxu0 %v1229
    %1885 = vmatpush1.bf16.msra.mxu0 %v1228
    %1886 = vmatprep.subr.bf16.mxu0 %v1233
    %1887 = vmatpush1.bf16.msra.mxu0 %v1232
    %1888 = vmatprep.subr.bf16.mxu0 %v1237
    %1889 = vmatpush1.bf16.msra.mxu0 %v1236
    %1890 = vmatprep.subr.bf16.mxu0 %v1241
    %1891 = vmatpush1.bf16.msra.mxu0 %v1240
    %1892 = vmatprep.subr.bf16.mxu0 %v1245
    %1893 = vmatpush1.bf16.msra.mxu0 %v1244
    %1894 = vmatprep.subr.bf16.mxu0 %v1249
    %1895 = vmatpush1.bf16.msra.mxu0 %v1248
    %1896 = vmatprep.subr.bf16.mxu0 %v1253
    %1897 = vmatpush1.bf16.msra.mxu0 %v1252
    %1898 = vmatprep.subr.bf16.mxu0 %v1257
    %1899 = vmatpush1.bf16.msra.mxu0 %v1256
    %1900 = vmatprep.subr.bf16.mxu0 %v1261
    %1901 = vmatpush1.bf16.msra.mxu0 %v1260
    %1902 = vmatprep.subr.bf16.mxu0 %v1265
    %1903 = vmatpush1.bf16.msra.mxu0 %v1264
    %1904 = vmatprep.subr.bf16.mxu0 %v1269
    %1905 = vmatpush1.bf16.msra.mxu0 %v1268
    %1906 = vmatprep.subr.bf16.mxu0 %v1273
    %1907 = vmatpush1.bf16.msra.mxu0 %v1272
    %1908 = vmatprep.subr.bf16.mxu0 %v1277
    %1909 = vmatpush1.bf16.msra.mxu0 %v1276
    %1910 = vmatprep.subr.bf16.mxu0 %v1281
    %1911 = vmatpush1.bf16.msra.mxu0 %v1280
    %1912 = vmatprep.subr.bf16.mxu0 %v1285
    %1913 = vmatpush1.bf16.msra.mxu0 %v1284
    %1914 = vmatprep.subr.bf16.mxu0 %v1289
    %1915 = vmatpush1.bf16.msra.mxu0 %v1288
    %1916 = vmatprep.mubr.bf16.mxu0 %v135
    %1917 = vmatmul.mubr.bf16.gmra.mrb[0].mxu0 %v134
    %v1918 = vpop.f32.mrb[0].mxu0
    %v1919 = vadd.f32 %v1878, %v1918
    %v1920 = vpop.f32.mrb[0].mxu0
    %v1921 = vadd.f32 %v1880, %v1920
    %v1922 = vpop.f32.mrb[0].mxu0
    %v1923 = vpop.f32.mrb[0].mxu0
    %1924 = vdwg.mxu0
    %1925 = vmatprep.subr.bf16.mxu0 %v1293
    %1926 = vmatpush1.bf16.msra.mxu0 %v1292
    %1927 = vmatprep.subr.bf16.mxu0 %v1297
    %1928 = vmatpush1.bf16.msra.mxu0 %v1296
    %1929 = vmatprep.subr.bf16.mxu0 %v1301
    %1930 = vmatpush1.bf16.msra.mxu0 %v1300
    %1931 = vmatprep.subr.bf16.mxu0 %v1305
    %1932 = vmatpush1.bf16.msra.mxu0 %v1304
    %1933 = vmatprep.subr.bf16.mxu0 %v1309
    %1934 = vmatpush1.bf16.msra.mxu0 %v1308
    %1935 = vmatprep.subr.bf16.mxu0 %v1313
    %1936 = vmatpush1.bf16.msra.mxu0 %v1312
    %1937 = vmatprep.subr.bf16.mxu0 %v1317
    %1938 = vmatpush1.bf16.msra.mxu0 %v1316
    %1939 = vmatprep.subr.bf16.mxu0 %v1321
    %1940 = vmatpush1.bf16.msra.mxu0 %v1320
    %1941 = vmatprep.subr.bf16.mxu0 %v1325
    %1942 = vmatpush1.bf16.msra.mxu0 %v1324
    %1943 = vmatprep.subr.bf16.mxu0 %v1329
    %1944 = vmatpush1.bf16.msra.mxu0 %v1328
    %1945 = vmatprep.subr.bf16.mxu0 %v1333
    %1946 = vmatpush1.bf16.msra.mxu0 %v1332
    %1947 = vmatprep.subr.bf16.mxu0 %v1337
    %1948 = vmatpush1.bf16.msra.mxu0 %v1336
    %1949 = vmatprep.subr.bf16.mxu0 %v1341
    %1950 = vmatpush1.bf16.msra.mxu0 %v1340
    %1951 = vmatprep.subr.bf16.mxu0 %v1345
    %1952 = vmatpush1.bf16.msra.mxu0 %v1344
    %1953 = vmatprep.subr.bf16.mxu0 %v1349
    %1954 = vmatpush1.bf16.msra.mxu0 %v1348
    %1955 = vmatprep.subr.bf16.mxu0 %v1353
    %1956 = vmatpush1.bf16.msra.mxu0 %v1352
    %1957 = vmatprep.mubr.bf16.mxu0 %v137
    %1958 = vmatmul.mubr.bf16.gmra.mrb[0].mxu0 %v136
    %v1959 = vpop.f32.mrb[0].mxu0
    %v1960 = vadd.f32 %v1919, %v1959
    %v1961 = vpop.f32.mrb[0].mxu0
    %v1962 = vadd.f32 %v1921, %v1961
    %v1963 = vpop.f32.mrb[0].mxu0
    %v1964 = vpop.f32.mrb[0].mxu0
    %1965 = vdwg.mxu0
    %1966 = vmatprep.subr.bf16.mxu0 %v1357
    %1967 = vmatpush1.bf16.msra.mxu0 %v1356
    %1968 = vmatprep.subr.bf16.mxu0 %v1361
    %1969 = vmatpush1.bf16.msra.mxu0 %v1360
    %1970 = vmatprep.subr.bf16.mxu0 %v1365
    %1971 = vmatpush1.bf16.msra.mxu0 %v1364
    %1972 = vmatprep.subr.bf16.mxu0 %v1369
    %1973 = vmatpush1.bf16.msra.mxu0 %v1368
    %1974 = vmatprep.subr.bf16.mxu0 %v1373
    %1975 = vmatpush1.bf16.msra.mxu0 %v1372
    %1976 = vmatprep.subr.bf16.mxu0 %v1377
    %1977 = vmatpush1.bf16.msra.mxu0 %v1376
    %1978 = vmatprep.subr.bf16.mxu0 %v1381
    %1979 = vmatpush1.bf16.msra.mxu0 %v1380
    %1980 = vmatprep.subr.bf16.mxu0 %v1385
    %1981 = vmatpush1.bf16.msra.mxu0 %v1384
    %1982 = vmatprep.subr.bf16.mxu0 %v1389
    %1983 = vmatpush1.bf16.msra.mxu0 %v1388
    %1984 = vmatprep.subr.bf16.mxu0 %v1393
    %1985 = vmatpush1.bf16.msra.mxu0 %v1392
    %1986 = vmatprep.subr.bf16.mxu0 %v1397
    %1987 = vmatpush1.bf16.msra.mxu0 %v1396
    %1988 = vmatprep.subr.bf16.mxu0 %v1401
    %1989 = vmatpush1.bf16.msra.mxu0 %v1400
    %1990 = vmatprep.subr.bf16.mxu0 %v1405
    %1991 = vmatpush1.bf16.msra.mxu0 %v1404
    %1992 = vmatprep.subr.bf16.mxu0 %v1409
    %1993 = vmatpush1.bf16.msra.mxu0 %v1408
    %1994 = vmatprep.subr.bf16.mxu0 %v1677
    %1995 = vmatpush1.bf16.msra.mxu0 %v1674
    %1996 = vmatprep.subr.bf16.mxu0 0
    %1997 = vmatpush1.bf16.msra.mxu0 0
    %1998 = vmatprep.mubr.bf16.mxu0 %v1664
    %1999 = vmatmul.mubr.bf16.gmra.mrb[0].mxu0 %v138
    %v2000 = vpop.f32.mrb[0].mxu0
    %v2001 = vadd.f32 %v1960, %v2000
    %v2002 = vpop.f32.mrb[0].mxu0
    %v2003 = vadd.f32 %v1962, %v2002
    %v2004 = vpop.f32.mrb[0].mxu0
    %v2005 = vpop.f32.mrb[0].mxu0
    %2006 = vdwg.mxu0
    %v2007 = vmax.f32 %v1837, 0.0
    %v2008 = vmax.f32 %v1839, 0.0
    %v2009 = vmax.f32 %v2001, 0.0
    %v2010 = vmax.f32 %v2003, 0.0
    %v2011 = vpack.c.bf16 %v2007, %v2007
    %v2012 = vpack.c.bf16 %v2008, %v2008
    %v2013 = vpack.c.bf16 %v2009, %v2009
    %v2014 = vpack.c.bf16 %v2010, %v2010
    // Predicated region
    $region34: #{classifier_forward.1} parent=1 // pred_check
      %p2015 = pneg %p50
    $region35: #{classifier_forward.1} parent=1 // pred_check_branch
      %2017 = sbr.rel (%p2015) target = $region37
    $region36: #{classifier_forward.1} parent=1 // pred_region
      %s2018 = smul.u32 4, 64
      %s2019 = smul.u32 %s2018, 2
      %s2020 = sshll.u32 %s2019, 4
      %2021 = dma.done [#allocation4], %s2020
    $region37: #{classifier_forward.1} parent=1 // pred_fallthru
      _
    %v2022 = vld [vmem:[#allocation2] sm:$0xff]
    %v2023 = vld [vmem:[#allocation2 + $0x8] sm:$0xff]
    %v2024 = vld [vmem:[#allocation2 + $0x10] sm:$0xff]
    %v2025 = vld [vmem:[#allocation2 + $0x18] sm:$0xff]
    %v2026 = vld [vmem:[#allocation2 + $0x20] sm:$0xff]
    %v2027 = vld [vmem:[#allocation2 + $0x28] sm:$0xff]
    %v2028 = vld [vmem:[#allocation2 + $0x30] sm:$0xff]
    %v2029 = vld [vmem:[#allocation2 + $0x38] sm:$0xff]
    %v2030 = vld [vmem:[#allocation2 + $0x40] sm:$0xff]
    %v2031 = vld [vmem:[#allocation2 + $0x48] sm:$0xff]
    %v2032 = vld [vmem:[#allocation2 + $0x50] sm:$0xff]
    %v2033 = vld [vmem:[#allocation2 + $0x58] sm:$0xff]
    %v2034 = vld [vmem:[#allocation2 + $0x60] sm:$0xff]
    %v2035 = vld [vmem:[#allocation2 + $0x68] sm:$0xff]
    %v2036 = vld [vmem:[#allocation2 + $0x70] sm:$0xff]
    %v2037 = vld [vmem:[#allocation2 + $0x78] sm:$0xff]
    %v2038 = vld [vmem:[#allocation2 + $0x80] sm:$0xff]
    %v2039 = vld [vmem:[#allocation2 + $0x88] sm:$0xff]
    %v2040 = vld [vmem:[#allocation2 + $0x90] sm:$0xff]
    %v2041 = vld [vmem:[#allocation2 + $0x98] sm:$0xff]
    %v2042 = vld [vmem:[#allocation2 + $0xa0] sm:$0xff]
    %v2043 = vld [vmem:[#allocation2 + $0xa8] sm:$0xff]
    %v2044 = vld [vmem:[#allocation2 + $0xb0] sm:$0xff]
    %v2045 = vld [vmem:[#allocation2 + $0xb8] sm:$0xff]
    %v2046 = vld [vmem:[#allocation2 + $0xc0] sm:$0xff]
    %v2047 = vld [vmem:[#allocation2 + $0xc8] sm:$0xff]
    %v2048 = vld [vmem:[#allocation2 + $0xd0] sm:$0xff]
    %v2049 = vld [vmem:[#allocation2 + $0xd8] sm:$0xff]
    %v2050 = vld [vmem:[#allocation2 + $0xe0] sm:$0xff]
    %v2051 = vld [vmem:[#allocation2 + $0xe8] sm:$0xff]
    %v2052 = vld [vmem:[#allocation2 + $0xf0] sm:$0xff]
    %v2053 = vld [vmem:[#allocation2 + $0xf8] sm:$0xff]
    %v2054 = vld [vmem:[#allocation2 + $0x100] sm:$0xff]
    %v2055 = vld [vmem:[#allocation2 + $0x108] sm:$0xff]
    %v2056 = vld [vmem:[#allocation2 + $0x110] sm:$0xff]
    %v2057 = vld [vmem:[#allocation2 + $0x118] sm:$0xff]
    %v2058 = vld [vmem:[#allocation2 + $0x120] sm:$0xff]
    %v2059 = vld [vmem:[#allocation2 + $0x128] sm:$0xff]
    %v2060 = vld [vmem:[#allocation2 + $0x130] sm:$0xff]
    %v2061 = vld [vmem:[#allocation2 + $0x138] sm:$0xff]
    %v2062 = vld [vmem:[#allocation2 + $0x140] sm:$0xff]
    %v2063 = vld [vmem:[#allocation2 + $0x148] sm:$0xff]
    %v2064 = vld [vmem:[#allocation2 + $0x150] sm:$0xff]
    %v2065 = vld [vmem:[#allocation2 + $0x158] sm:$0xff]
    %v2066 = vld [vmem:[#allocation2 + $0x160] sm:$0xff]
    %v2067 = vld [vmem:[#allocation2 + $0x168] sm:$0xff]
    %v2068 = vld [vmem:[#allocation2 + $0x170] sm:$0xff]
    %v2069 = vld [vmem:[#allocation2 + $0x178] sm:$0xff]
    %v2070 = vld [vmem:[#allocation2 + $0x180] sm:$0xff]
    %v2071 = vld [vmem:[#allocation2 + $0x188] sm:$0xff]
    %v2072 = vld [vmem:[#allocation2 + $0x190] sm:$0xff]
    %v2073 = vld [vmem:[#allocation2 + $0x198] sm:$0xff]
    %v2074 = vld [vmem:[#allocation2 + $0x1a0] sm:$0xff]
    %v2075 = vld [vmem:[#allocation2 + $0x1a8] sm:$0xff]
    %v2076 = vld [vmem:[#allocation2 + $0x1b0] sm:$0xff]
    %v2077 = vld [vmem:[#allocation2 + $0x1b8] sm:$0xff]
    %v2078 = vld [vmem:[#allocation2 + $0x1c0] sm:$0xff]
    %v2079 = vld [vmem:[#allocation2 + $0x1c8] sm:$0xff]
    %v2080 = vld [vmem:[#allocation2 + $0x1d0] sm:$0xff]
    %v2081 = vld [vmem:[#allocation2 + $0x1d8] sm:$0xff]
    %v2082 = vld [vmem:[#allocation2 + $0x1e0] sm:$0xff]
    %v2083 = vld [vmem:[#allocation2 + $0x1e8] sm:$0xff]
    %v2084 = vld [vmem:[#allocation2 + $0x1f0] sm:$0xff]
    %v2085 = vld [vmem:[#allocation2 + $0x1f8] sm:$0xff]
    %v2086 = vld [vmem:[%s4] sm:$0x3]
    %v2088 = vlaneseq
    %v2089 = vshrl.u32 %v2088, 7
    %v2090 = vsub.s32 0, %v2089
    %v2091 = vrot.slane %v2086, %v2090
    %v2092 = vlaneseq
    %v2093 = vshrl.u32 %v2092, 7
    %v2094 = vsub.s32 1, %v2093
    %v2095 = vrot.slane %v2086, %v2094
    %2098 = vmatprep.subr.bf16.mxu0 %v2023
    %2099 = vmatpush1.bf16.msra.mxu0 %v2022
    %2100 = vmatprep.subr.bf16.mxu0 %v2025
    %2101 = vmatpush1.bf16.msra.mxu0 %v2024
    %2102 = vmatprep.subr.bf16.mxu0 %v2027
    %2103 = vmatpush1.bf16.msra.mxu0 %v2026
    %2104 = vmatprep.subr.bf16.mxu0 %v2029
    %2105 = vmatpush1.bf16.msra.mxu0 %v2028
    %2106 = vmatprep.subr.bf16.mxu0 %v2031
    %2107 = vmatpush1.bf16.msra.mxu0 %v2030
    %2108 = vmatprep.subr.bf16.mxu0 %v2033
    %2109 = vmatpush1.bf16.msra.mxu0 %v2032
    %2110 = vmatprep.subr.bf16.mxu0 %v2035
    %2111 = vmatpush1.bf16.msra.mxu0 %v2034
    %2112 = vmatprep.subr.bf16.mxu0 %v2037
    %2113 = vmatpush1.bf16.msra.mxu0 %v2036
    %2114 = vmatprep.subr.bf16.mxu0 %v2039
    %2115 = vmatpush1.bf16.msra.mxu0 %v2038
    %2116 = vmatprep.subr.bf16.mxu0 %v2041
    %2117 = vmatpush1.bf16.msra.mxu0 %v2040
    %2118 = vmatprep.subr.bf16.mxu0 %v2043
    %2119 = vmatpush1.bf16.msra.mxu0 %v2042
    %2120 = vmatprep.subr.bf16.mxu0 %v2045
    %2121 = vmatpush1.bf16.msra.mxu0 %v2044
    %2122 = vmatprep.subr.bf16.mxu0 %v2047
    %2123 = vmatpush1.bf16.msra.mxu0 %v2046
    %2124 = vmatprep.subr.bf16.mxu0 %v2049
    %2125 = vmatpush1.bf16.msra.mxu0 %v2048
    %2126 = vmatprep.subr.bf16.mxu0 %v2051
    %2127 = vmatpush1.bf16.msra.mxu0 %v2050
    %2128 = vmatprep.subr.bf16.mxu0 %v2053
    %2129 = vmatpush1.bf16.msra.mxu0 %v2052
    %2130 = vmatprep.mubr.bf16.mxu0 %v2012
    %2131 = vmatmul.mubr.bf16.gmra.mrb[0].mxu0 %v2011
    %v2132 = vpop.f32.mrb[0].mxu0
    %v2133 = vadd.f32 %v2091, %v2132
    %v2134 = vpop.f32.mrb[0].mxu0
    %v2135 = vadd.f32 %v2095, %v2134
    %v2136 = vpop.f32.mrb[0].mxu0
    %v2137 = vpop.f32.mrb[0].mxu0
    %2138 = vdwg.mxu0
    %2139 = vmatprep.subr.bf16.mxu0 %v2055
    %2140 = vmatpush1.bf16.msra.mxu0 %v2054
    %2141 = vmatprep.subr.bf16.mxu0 %v2057
    %2142 = vmatpush1.bf16.msra.mxu0 %v2056
    %2143 = vmatprep.subr.bf16.mxu0 %v2059
    %2144 = vmatpush1.bf16.msra.mxu0 %v2058
    %2145 = vmatprep.subr.bf16.mxu0 %v2061
    %2146 = vmatpush1.bf16.msra.mxu0 %v2060
    %2147 = vmatprep.subr.bf16.mxu0 %v2063
    %2148 = vmatpush1.bf16.msra.mxu0 %v2062
    %2149 = vmatprep.subr.bf16.mxu0 %v2065
    %2150 = vmatpush1.bf16.msra.mxu0 %v2064
    %2151 = vmatprep.subr.bf16.mxu0 %v2067
    %2152 = vmatpush1.bf16.msra.mxu0 %v2066
    %2153 = vmatprep.subr.bf16.mxu0 %v2069
    %2154 = vmatpush1.bf16.msra.mxu0 %v2068
    %2155 = vmatprep.subr.bf16.mxu0 %v2071
    %2156 = vmatpush1.bf16.msra.mxu0 %v2070
    %2157 = vmatprep.subr.bf16.mxu0 %v2073
    %2158 = vmatpush1.bf16.msra.mxu0 %v2072
    %2159 = vmatprep.subr.bf16.mxu0 %v2075
    %2160 = vmatpush1.bf16.msra.mxu0 %v2074
    %2161 = vmatprep.subr.bf16.mxu0 %v2077
    %2162 = vmatpush1.bf16.msra.mxu0 %v2076
    %2163 = vmatprep.subr.bf16.mxu0 %v2079
    %2164 = vmatpush1.bf16.msra.mxu0 %v2078
    %2165 = vmatprep.subr.bf16.mxu0 %v2081
    %2166 = vmatpush1.bf16.msra.mxu0 %v2080
    %2167 = vmatprep.subr.bf16.mxu0 %v2083
    %2168 = vmatpush1.bf16.msra.mxu0 %v2082
    %2169 = vmatprep.subr.bf16.mxu0 %v2085
    %2170 = vmatpush1.bf16.msra.mxu0 %v2084
    %2171 = vmatprep.mubr.bf16.mxu0 %v2014
    %2172 = vmatmul.mubr.bf16.gmra.mrb[0].mxu0 %v2013
    %v2173 = vpop.f32.mrb[0].mxu0
    %v2174 = vadd.f32 %v2133, %v2173
    %v2175 = vpop.f32.mrb[0].mxu0
    %v2176 = vadd.f32 %v2135, %v2175
    %v2177 = vpop.f32.mrb[0].mxu0
    %v2178 = vpop.f32.mrb[0].mxu0
    %2179 = vdwg.mxu0
    %v2180 = vmax.f32 %v2174, 0.0
    %v2181 = vmax.f32 %v2176, 0.0
    %v2182 = vpack.c.bf16 %v2180, %v2180
    %v2183 = vpack.c.bf16 %v2181, %v2181
    // Predicated region
    $region38: #{classifier_forward.1} parent=1 // pred_check
      %p2184 = pneg %p50
    $region39: #{classifier_forward.1} parent=1 // pred_check_branch
      %2186 = sbr.rel (%p2184) target = $region41
    $region40: #{classifier_forward.1} parent=1 // pred_region
      %s2187 = scalar_lea.sflag [#allocation4], 1
      %s2188 = smul.u32 4, 32
      %s2189 = smul.u32 %s2188, 3
      %s2190 = sshll.u32 %s2189, 4
      %2191 = dma.done %s2187, %s2190
    $region41: #{classifier_forward.1} parent=1 // pred_fallthru
      _
    %v2192 = vld [vmem:[#allocation3] sm:$0xff]
    %v2193 = vld [vmem:[#allocation3 + $0x8] sm:$0xff]
    %v2194 = vld [vmem:[#allocation3 + $0x10] sm:$0xff]
    %v2195 = vld [vmem:[#allocation3 + $0x18] sm:$0xff]
    %v2196 = vld [vmem:[#allocation3 + $0x20] sm:$0xff]
    %v2197 = vld [vmem:[#allocation3 + $0x28] sm:$0xff]
    %v2198 = vld [vmem:[#allocation3 + $0x30] sm:$0xff]
    %v2199 = vld [vmem:[#allocation3 + $0x38] sm:$0xff]
    %v2200 = vld [vmem:[#allocation3 + $0x40] sm:$0xff]
    %v2201 = vld [vmem:[#allocation3 + $0x48] sm:$0xff]
    %v2202 = vld [vmem:[#allocation3 + $0x50] sm:$0xff]
    %v2203 = vld [vmem:[#allocation3 + $0x58] sm:$0xff]
    %v2204 = vld [vmem:[#allocation3 + $0x60] sm:$0xff]
    %v2205 = vld [vmem:[#allocation3 + $0x68] sm:$0xff]
    %v2206 = vld [vmem:[#allocation3 + $0x70] sm:$0xff]
    %v2207 = vld [vmem:[#allocation3 + $0x78] sm:$0xff]
    %v2208 = vld [vmem:[#allocation3 + $0x80] sm:$0xff]
    %v2209 = vld [vmem:[#allocation3 + $0x88] sm:$0xff]
    %v2210 = vld [vmem:[#allocation3 + $0x90] sm:$0xff]
    %v2211 = vld [vmem:[#allocation3 + $0x98] sm:$0xff]
    %v2212 = vld [vmem:[#allocation3 + $0xa0] sm:$0xff]
    %v2213 = vld [vmem:[#allocation3 + $0xa8] sm:$0xff]
    %v2214 = vld [vmem:[#allocation3 + $0xb0] sm:$0xff]
    %v2215 = vld [vmem:[#allocation3 + $0xb8] sm:$0xff]
    %v2216 = vld [vmem:[#allocation3 + $0xc0] sm:$0xff]
    %v2217 = vld [vmem:[#allocation3 + $0xc8] sm:$0xff]
    %v2218 = vld [vmem:[#allocation3 + $0xd0] sm:$0xff]
    %v2219 = vld [vmem:[#allocation3 + $0xd8] sm:$0xff]
    %v2220 = vld [vmem:[#allocation3 + $0xe0] sm:$0xff]
    %v2221 = vld [vmem:[#allocation3 + $0xe8] sm:$0xff]
    %v2222 = vld [vmem:[#allocation3 + $0xf0] sm:$0xff]
    %v2223 = vld [vmem:[#allocation3 + $0xf8] sm:$0xff]
    %v2224 = vld [vmem:[#allocation3 + $0x100] sm:$0xff]
    %v2225 = vld [vmem:[#allocation3 + $0x108] sm:$0xff]
    %v2226 = vld [vmem:[#allocation3 + $0x110] sm:$0xff]
    %v2227 = vld [vmem:[#allocation3 + $0x118] sm:$0xff]
    %v2228 = vld [vmem:[#allocation3 + $0x120] sm:$0xff]
    %v2229 = vld [vmem:[#allocation3 + $0x128] sm:$0xff]
    %v2230 = vld [vmem:[#allocation3 + $0x130] sm:$0xff]
    %v2231 = vld [vmem:[#allocation3 + $0x138] sm:$0xff]
    %v2232 = vld [vmem:[#allocation3 + $0x140] sm:$0xff]
    %v2233 = vld [vmem:[#allocation3 + $0x148] sm:$0xff]
    %v2234 = vld [vmem:[#allocation3 + $0x150] sm:$0xff]
    %v2235 = vld [vmem:[#allocation3 + $0x158] sm:$0xff]
    %v2236 = vld [vmem:[#allocation3 + $0x160] sm:$0xff]
    %v2237 = vld [vmem:[#allocation3 + $0x168] sm:$0xff]
    %v2238 = vld [vmem:[#allocation3 + $0x170] sm:$0xff]
    %v2239 = vld [vmem:[#allocation3 + $0x178] sm:$0xff]
    %v2240 = vld [vmem:[%s6] sm:$0x7]
    %v2242 = vlaneseq
    %v2243 = vshrl.u32 %v2242, 7
    %v2244 = vsub.s32 0, %v2243
    %v2245 = vrot.slane %v2240, %v2244
    %v2246 = vlaneseq
    %v2247 = vshrl.u32 %v2246, 7
    %v2248 = vsub.s32 1, %v2247
    %v2249 = vrot.slane %v2240, %v2248
    %v2250 = vlaneseq
    %v2251 = vshrl.u32 %v2250, 7
    %v2252 = vsub.s32 2, %v2251
    %v2253 = vrot.slane %v2240, %v2252
    %2257 = vmatprep.subr.bf16.mxu0 %v2193
    %2258 = vmatpush1.bf16.msra.mxu0 %v2192
    %2259 = vmatprep.subr.bf16.mxu0 %v2196
    %2260 = vmatpush1.bf16.msra.mxu0 %v2195
    %2261 = vmatprep.subr.bf16.mxu0 %v2199
    %2262 = vmatpush1.bf16.msra.mxu0 %v2198
    %2263 = vmatprep.subr.bf16.mxu0 %v2202
    %2264 = vmatpush1.bf16.msra.mxu0 %v2201
    %2265 = vmatprep.subr.bf16.mxu0 %v2205
    %2266 = vmatpush1.bf16.msra.mxu0 %v2204
    %2267 = vmatprep.subr.bf16.mxu0 %v2208
    %2268 = vmatpush1.bf16.msra.mxu0 %v2207
    %2269 = vmatprep.subr.bf16.mxu0 %v2211
    %2270 = vmatpush1.bf16.msra.mxu0 %v2210
    %2271 = vmatprep.subr.bf16.mxu0 %v2214
    %2272 = vmatpush1.bf16.msra.mxu0 %v2213
    %2273 = vmatprep.subr.bf16.mxu0 %v2217
    %2274 = vmatpush1.bf16.msra.mxu0 %v2216
    %2275 = vmatprep.subr.bf16.mxu0 %v2220
    %2276 = vmatpush1.bf16.msra.mxu0 %v2219
    %2277 = vmatprep.subr.bf16.mxu0 %v2223
    %2278 = vmatpush1.bf16.msra.mxu0 %v2222
    %2279 = vmatprep.subr.bf16.mxu0 %v2226
    %2280 = vmatpush1.bf16.msra.mxu0 %v2225
    %2281 = vmatprep.subr.bf16.mxu0 %v2229
    %2282 = vmatpush1.bf16.msra.mxu0 %v2228
    %2283 = vmatprep.subr.bf16.mxu0 %v2232
    %2284 = vmatpush1.bf16.msra.mxu0 %v2231
    %2285 = vmatprep.subr.bf16.mxu0 %v2235
    %2286 = vmatpush1.bf16.msra.mxu0 %v2234
    %2287 = vmatprep.subr.bf16.mxu0 %v2238
    %2288 = vmatpush1.bf16.msra.mxu0 %v2237
    %2289 = vmatprep.mubr.bf16.mxu0 %v2183
    %2290 = vmatmul.mubr.bf16.gmra.mrb[0].mxu0 %v2182
    %v2291 = vpop.f32.mrb[0].mxu0
    %v2292 = vadd.f32 %v2245, %v2291
    %v2293 = vpop.f32.mrb[0].mxu0
    %v2294 = vadd.f32 %v2249, %v2293
    %v2295 = vpop.f32.mrb[0].mxu0
    %v2296 = vpop.f32.mrb[0].mxu0
    %2297 = vdwg.mxu0
    %2298 = vmatprep.subr.bf16.mxu0 0
    %2299 = vmatpush1.bf16.msra.mxu0 %v2194
    %2300 = vmatprep.subr.bf16.mxu0 0
    %2301 = vmatpush1.bf16.msra.mxu0 %v2197
    %2302 = vmatprep.subr.bf16.mxu0 0
    %2303 = vmatpush1.bf16.msra.mxu0 %v2200
    %2304 = vmatprep.subr.bf16.mxu0 0
    %2305 = vmatpush1.bf16.msra.mxu0 %v2203
    %2306 = vmatprep.subr.bf16.mxu0 0
    %2307 = vmatpush1.bf16.msra.mxu0 %v2206
    %2308 = vmatprep.subr.bf16.mxu0 0
    %2309 = vmatpush1.bf16.msra.mxu0 %v2209
    %2310 = vmatprep.subr.bf16.mxu0 0
    %2311 = vmatpush1.bf16.msra.mxu0 %v2212
    %2312 = vmatprep.subr.bf16.mxu0 0
    %2313 = vmatpush1.bf16.msra.mxu0 %v2215
    %2314 = vmatprep.subr.bf16.mxu0 0
    %2315 = vmatpush1.bf16.msra.mxu0 %v2218
    %2316 = vmatprep.subr.bf16.mxu0 0
    %2317 = vmatpush1.bf16.msra.mxu0 %v2221
    %2318 = vmatprep.subr.bf16.mxu0 0
    %2319 = vmatpush1.bf16.msra.mxu0 %v2224
    %2320 = vmatprep.subr.bf16.mxu0 0
    %2321 = vmatpush1.bf16.msra.mxu0 %v2227
    %2322 = vmatprep.subr.bf16.mxu0 0
    %2323 = vmatpush1.bf16.msra.mxu0 %v2230
    %2324 = vmatprep.subr.bf16.mxu0 0
    %2325 = vmatpush1.bf16.msra.mxu0 %v2233
    %2326 = vmatprep.subr.bf16.mxu0 0
    %2327 = vmatpush1.bf16.msra.mxu0 %v2236
    %2328 = vmatprep.subr.bf16.mxu0 0
    %2329 = vmatpush1.bf16.msra.mxu0 %v2239
    %2330 = vmatprep.mubr.bf16.mxu0 %v2183
    %2331 = vmatmul.mubr.bf16.gmra.mrb[0].mxu0 %v2182
    %v2332 = vpop.f32.mrb[0].mxu0
    %v2333 = vadd.f32 %v2253, %v2332
    %v2334 = vpop.f32.mrb[0].mxu0
    %v2335 = vpop.f32.mrb[0].mxu0
    %v2336 = vpop.f32.mrb[0].mxu0
    %2337 = vdwg.mxu0
    %2338 = vst [vmem:[#allocation10] sm:$0xff] %v2292
    %2339 = vst [vmem:[#allocation10 + $0x8] sm:$0xff] %v2294
    %2340 = vst [vmem:[#allocation10 + $0x10] sm:$0xff] %v2333
    // Predicated region
    $region42: #{classifier_forward.1} parent=1 // pred_check
      _
    $region43: #{classifier_forward.1} parent=1 // pred_check_branch
      %2342 = sbr.rel (0) target = $region45
    $region44: #{classifier_forward.1} parent=1 // pred_region
      %s2344 = ssub.s32 384, 384
      %2345 = vsyncadd [#allocation7], %s2344
      %s2347 = sshll.u32 [#allocation10], 4
      %s2348 = int_to_ptr.vmem [resolvable:$true] %s2347
      %2350 = dma.vmem_to_hbm [thread:$0]  %s2348, 384, %s7, [#allocation7]
    $region45: #{classifier_forward.1} parent=1 // pred_fallthru
      _
    // Predicated region
    $region46: #{classifier_forward.1} parent=1 // pred_check
      _
    $region47: #{classifier_forward.1} parent=1 // pred_check_branch
      %2352 = sbr.rel (0) target = $region49
    $region48: #{classifier_forward.1} parent=1 // pred_region
      %2353 = dma.done [#allocation7], 384
    $region49: #{classifier_forward.1} parent=1 // pred_fallthru
      _
    %2354 = vsyncpa [#allocation6], 1
    %2355 = vsyncpa [#allocation9], 1
    %2356 = vsyncpa [#allocation7], 1
  %2357 = vsyncmov [#allocation4]
  %s2358 = vpop.sfrf %2357
  %p2359 = scmp.eq.s32.totalorder %s2358, 0
  %p2360 = pneg %p2359
  %2362 = shalt.err (%p2360)
  %s2363 = scalar_lea.sflag [#allocation4], 1
  %2364 = vsyncmov %s2363
  %s2365 = vpop.sfrf %2364
  %p2366 = scmp.eq.s32.totalorder %s2365, 0
  %p2367 = pneg %p2366
  %2369 = shalt.err (%p2367)

</llo_original>
